<compile_context>
chip_gen: v6e
topology: v6e:2x2x1
jax: 0.10.0
libtpu: 0.0.40
codegen_flags: <defaults>
</compile_context>

<pallas_src>
import functools

import jax
import jax.numpy as jnp
from jax.experimental import pallas as pl
from jax.experimental.pallas import tpu as pltpu


# ----------------------------------------------------------------------------
# Single fused kernel.
# Activation layout everywhere: 2-D f32 slab
#   rows  = (batch, image-row)          (sublane axis)
#   lanes = (image-col, channel)        (lane axis, lane-dense)
# ----------------------------------------------------------------------------
def fused_net_kernel(x_ref, b1_ref, sh1_ref, d1_ref, b2_ref, sh2_ref, d2_ref,
                     fc1w_ref, fc1b_ref, fc2w_ref, fc2b_ref, out_ref,
                     s1, s2, *, N, H1, W1, C1, H2, W2, C2, HP, WP, D1):
    f32 = jnp.float32

    def conv_bn_relu(xf, b_ref, d_ref, sh_ref):
        # xf: (N*H, W*Cin);  b_ref: (3, W*Cin, W*Cout);  d_ref: (2, N*H, N*H)
        u0 = jnp.dot(xf, b_ref[0], preferred_element_type=f32)   # tap dy = 0
        u1 = jnp.dot(xf, b_ref[1], preferred_element_type=f32)   # tap dy = 1
        u2 = jnp.dot(xf, b_ref[2], preferred_element_type=f32)   # tap dy = 2
        acc = (u1
               + jnp.dot(d_ref[0], u0, preferred_element_type=f32)   # rows shifted down
               + jnp.dot(d_ref[1], u2, preferred_element_type=f32))  # rows shifted up
        # BN (eval, scale folded into weights) -> only shift, then ReLU.
        return jnp.maximum(acc + sh_ref[...], 0.0)

    # ---- layer 1: conv(1->C1, 3x3, pad 1) + BN + ReLU ------------------------
    y1 = conv_bn_relu(x_ref[...], b1_ref, d1_ref, sh1_ref)        # (N*H1, W1*C1)

    # ---- 2x2 max pool: rows via strided reads, cols via lane chunks ----------
    # TODO(synk): nn.Dropout2d is identity at inference; training-mode channel
    # dropout is not implemented.
    s1[...] = y1
    hp1 = jnp.maximum(s1[pl.ds(0, N * H2, stride=2), :],
                      s1[pl.ds(1, N * H2, stride=2), :])          # (N*H2, W1*C1)
    x2 = jnp.concatenate(
        [jnp.maximum(hp1[:, (2 * w) * C1:(2 * w + 1) * C1],
                     hp1[:, (2 * w + 1) * C1:(2 * w + 2) * C1])
         for w in range(W2)], axis=1)                             # (N*H2, W2*C1)

    # ---- layer 2: conv(C1->C2, 3x3, pad 1) + BN + ReLU -----------------------
    y2 = conv_bn_relu(x2, b2_ref, d2_ref, sh2_ref)                # (N*H2, W2*C2)

    # ---- 2x2 max pool fused with fc1 (flatten folded into fc1 weight layout) -
    s2[...] = y2
    acc = jnp.zeros((N, D1), f32)
    for h in range(HP):
        ra = s2[pl.ds(2 * h, N, stride=H2), :]                    # rows (n, 2h)
        rb = s2[pl.ds(2 * h + 1, N, stride=H2), :]                # rows (n, 2h+1)
        hp2 = jnp.maximum(ra, rb)                                 # (N, W2*C2)
        lhs = jnp.concatenate(
            [jnp.maximum(hp2[:, (2 * w) * C2:(2 * w + 1) * C2],
                         hp2[:, (2 * w + 1) * C2:(2 * w + 2) * C2])
             for w in range(WP)], axis=1)                         # (N, WP*C2)
        acc = acc + jnp.dot(lhs, fc1w_ref[h], preferred_element_type=f32)
    h_fc = acc + fc1b_ref[...]                                    # (N, D1)

    # ---- fc2 ------------------------------------------------------------------
    out_ref[...] = (jnp.dot(h_fc, fc2w_ref[...], preferred_element_type=f32)
                    + fc2b_ref[...]).astype(out_ref.dtype)


# ----------------------------------------------------------------------------
# One-time parameter preparation (outside the per-inference path).
# ----------------------------------------------------------------------------
def fold_bn(conv_w, conv_b, bn, eps=1e-5):
    gamma, beta, mean, var = bn
    scale = gamma / jnp.sqrt(var + eps)
    return conv_w * scale, beta - mean * scale + conv_b * scale


def banded_conv_weight(w_f, out_w):
    """(3,3,Cin,Cout) BN-folded conv weight -> (3, out_w*Cin, out_w*Cout).
    B[dy] performs the dx shift (with zero-pad column behaviour folded in) and
    the Cin->Cout mixing in one MXU contraction over the (col, channel) lanes."""
    mats = []
    for dy in range(3):
        b = jnp.zeros((out_w * w_f.shape[2], out_w * w_f.shape[3]), jnp.float32)
        for dx in range(3):
            sel = jnp.eye(out_w, out_w, k=1 - dx, dtype=jnp.float32)  # sel[w+dx-1, w]=1
            b = b + jnp.kron(sel, w_f[dy, dx])
        mats.append(b)
    return jnp.stack(mats)


def row_shift_matrices(n, h):
    """(2, n*h, n*h): [0] shifts rows down by one within each image (zero fill),
    [1] shifts rows up by one; applies the conv dy offsets as MXU matmuls."""
    m = n * h
    keep = (jnp.arange(m) % h != 0).astype(jnp.float32)
    down = jnp.eye(m, k=-1, dtype=jnp.float32) * keep[:, None]
    return jnp.stack([down, down.T])


def prepare_params(P, height, width):
    c1, c2 = P['w1'].shape[-1], P['w2'].shape[-1]
    w2_ = width // 2
    hp_, wp_ = height // 4, width // 4
    d1 = P['fc1_w'].shape[-1]

    w1f, sh1 = fold_bn(P['w1'], P['bconv1'], P['bn1'])
    w2f, sh2 = fold_bn(P['w2'], P['bconv2'], P['bn2'])

    # fc1 rows are in PyTorch NCHW-flatten order (c, h, w); regroup into per-row
    # blocks with (w, c) lane order so no activation transpose is needed in-kernel.
    fc1w = (P['fc1_w']
            .reshape(c2, hp_, wp_, d1)
            .transpose(1, 2, 0, 3)
            .reshape(hp_, wp_ * c2, d1))

    return {
        'b1': banded_conv_weight(w1f, width),                      # (3, W1, W1*c1)
        'sh1': jnp.tile(sh1, (width,)).reshape(1, width * c1),
        'b2': banded_conv_weight(w2f, w2_),                        # (3, W2*c1, W2*c2)
        'sh2': jnp.tile(sh2, (w2_,)).reshape(1, w2_ * c2),
        'fc1w': fc1w,                                              # (HP, WP*c2, d1)
        'fc1b': P['fc1_b'].reshape(1, d1),
        'fc2w': P['fc2_w'],                                        # (d1, 2)
        'fc2b': P['fc2_b'].reshape(1, 2),
    }


# ----------------------------------------------------------------------------
# Full forward (conv_layers == 2): one fused pallas_call.
# ----------------------------------------------------------------------------
def net_forward(x_nchw, K, *, height, width):
    n = x_nchw.shape[0]
    h2, w2 = height // 2, width // 2
    hp_, wp_ = height // 4, width // 4
    c1 = K['sh1'].shape[-1] // width
    c2 = K['sh2'].shape[-1] // w2
    d1 = K['fc1b'].shape[-1]

    x = x_nchw.reshape(n * height, width)     # NCHW with C=1: pure metadata reshape
    d1m = row_shift_matrices(n, height)       # compile-time constants under jit
    d2m = row_shift_matrices(n, h2)

    kernel = functools.partial(
        fused_net_kernel, N=n, H1=height, W1=width, C1=c1,
        H2=h2, W2=w2, C2=c2, HP=hp_, WP=wp_, D1=d1)

    return pl.pallas_call(
        kernel,
        out_shape=jax.ShapeDtypeStruct((n, 2), jnp.float32),
        scratch_shapes=[
            pltpu.VMEM((n * height, width * c1), jnp.float32),     # conv1 activations
            pltpu.VMEM((n * h2, w2 * c2), jnp.float32),            # conv2 activations
        ],
    )(x, K['b1'], K['sh1'], d1m, K['b2'], K['sh2'], d2m,
      K['fc1w'], K['fc1b'], K['fc2w'], K['fc2b'])


# ----------------------------------------------------------------------------
# Deterministic synthetic parameters (module-consistent shapes).
# ----------------------------------------------------------------------------
def init_params(key, height, width, hp):
    nc = hp['num_channels']
    c1, c2 = 8 * nc, 8 * nc * 2
    keys = jax.random.split(key, 16)

    def norm(k, shape, s=0.1):
        return s * jax.random.normal(k, shape, jnp.float32)

    def bn(kg, kb, km, kv, c):
        gamma = 1.0 + 0.1 * jax.random.normal(kg, (c,), jnp.float32)
        beta = 0.1 * jax.random.normal(kb, (c,), jnp.float32)
        mean = 0.1 * jax.random.normal(km, (c,), jnp.float32)
        var = jax.random.uniform(kv, (c,), jnp.float32, minval=0.5, maxval=1.5)
        return gamma, beta, mean, var

    P = {
        'w1': norm(keys[0], (3, 3, 1, c1)),          # (kh, kw, Cin, Cout)
        'bconv1': norm(keys[1], (c1,)),
        'w2': norm(keys[2], (3, 3, c1, c2)),
        'bconv2': norm(keys[3], (c2,)),
        'bn1': bn(keys[4], keys[5], keys[6], keys[7], c1),
        'bn2': bn(keys[8], keys[9], keys[10], keys[11], c2),
    }
    fc1_in = c2 * (height // 4) * (width // 4)
    fc1_out = 2 ** (hp['dense_nodes'] + 4)
    P['fc1_w'] = norm(keys[12], (fc1_in, fc1_out))   # (in, out); rows in NCHW-flatten order
    P['fc1_b'] = norm(keys[13], (fc1_out,))
    P['fc2_w'] = norm(keys[14], (fc1_out, 2))
    P['fc2_b'] = norm(keys[15], (2,))
    return P


if __name__ == "__main__":
    height = width = 16
    hparams = {'conv_layers': 2, 'num_channels': 1, 'dense_nodes': 1, 'dropout': 0.25}

    key = jax.random.PRNGKey(0)
    kx, kp = jax.random.split(key)
    x = jax.random.normal(kx, (2, 1, height, width), jnp.float32)   # NCHW like PyTorch
    P = init_params(kp, height, width, hparams)
    K = prepare_params(P, height, width)

    fwd = jax.jit(functools.partial(net_forward, height=height, width=width))
    out = fwd(x, K)
    jax.block_until_ready(out)
    assert out.shape == (2, 2) and out.dtype == jnp.float32
    print("KERNEL_OK")
</pallas_src>

<mosaic_0001>
module attributes {stable_mosaic.version = 11 : i64} {
  func.func @fused_net_kernel(%arg0: memref<32x16xf32, #tpu.memory_space<vmem>>, %arg1: memref<3x16x128xf32, #tpu.memory_space<vmem>>, %arg2: memref<1x128xf32, #tpu.memory_space<vmem>>, %arg3: memref<2x32x32xf32, #tpu.memory_space<vmem>>, %arg4: memref<3x64x128xf32, #tpu.memory_space<vmem>>, %arg5: memref<1x128xf32, #tpu.memory_space<vmem>>, %arg6: memref<2x16x16xf32, #tpu.memory_space<vmem>>, %arg7: memref<4x64x32xf32, #tpu.memory_space<vmem>>, %arg8: memref<1x32xf32, #tpu.memory_space<vmem>>, %arg9: memref<32x2xf32, #tpu.memory_space<vmem>>, %arg10: memref<1x2xf32, #tpu.memory_space<vmem>>, %arg11: memref<2x2xf32, #tpu.memory_space<vmem>>, %arg12: memref<32x128xf32, #tpu.memory_space<vmem>>, %arg13: memref<16x128xf32, #tpu.memory_space<vmem>>) attributes {dimension_semantics = [], scalar_prefetch = 0 : i64, scratch_operands = 2 : i64, tpu.core_type = #tpu.core_type<tc>} {
    %c0 = arith.constant 0 : index
    %c0_0 = arith.constant 0 : index
    %0 = vector.load %arg0[%c0, %c0_0] : memref<32x16xf32, #tpu.memory_space<vmem>>, vector<32x16xf32>
    %c0_1 = arith.constant 0 : index
    %c0_2 = arith.constant 0 : index
    %c0_3 = arith.constant 0 : index
    %1 = vector.load %arg1[%c0_1, %c0_2, %c0_3] : memref<3x16x128xf32, #tpu.memory_space<vmem>>, vector<1x16x128xf32>
    %2 = vector.shape_cast %1 : vector<1x16x128xf32> to vector<16x128xf32>
    %cst = arith.constant dense<0.000000e+00> : vector<32x128xf32>
    %3 = tpu.matmul %0, %2, %cst {dimension_numbers = #tpu.dot_dimension_numbers<[1], [0], [0], [1], [0, 0, 1, 1], [], []>} : vector<32x16xf32>, vector<16x128xf32>, vector<32x128xf32> -> vector<32x128xf32>
    %c1 = arith.constant 1 : index
    %c0_4 = arith.constant 0 : index
    %c0_5 = arith.constant 0 : index
    %4 = vector.load %arg1[%c1, %c0_4, %c0_5] : memref<3x16x128xf32, #tpu.memory_space<vmem>>, vector<1x16x128xf32>
    %5 = vector.shape_cast %4 : vector<1x16x128xf32> to vector<16x128xf32>
    %cst_6 = arith.constant dense<0.000000e+00> : vector<32x128xf32>
    %6 = tpu.matmul %0, %5, %cst_6 {dimension_numbers = #tpu.dot_dimension_numbers<[1], [0], [0], [1], [0, 0, 1, 1], [], []>} : vector<32x16xf32>, vector<16x128xf32>, vector<32x128xf32> -> vector<32x128xf32>
    %c2 = arith.constant 2 : index
    %c0_7 = arith.constant 0 : index
    %c0_8 = arith.constant 0 : index
    %7 = vector.load %arg1[%c2, %c0_7, %c0_8] : memref<3x16x128xf32, #tpu.memory_space<vmem>>, vector<1x16x128xf32>
    %8 = vector.shape_cast %7 : vector<1x16x128xf32> to vector<16x128xf32>
    %cst_9 = arith.constant dense<0.000000e+00> : vector<32x128xf32>
    %9 = tpu.matmul %0, %8, %cst_9 {dimension_numbers = #tpu.dot_dimension_numbers<[1], [0], [0], [1], [0, 0, 1, 1], [], []>} : vector<32x16xf32>, vector<16x128xf32>, vector<32x128xf32> -> vector<32x128xf32>
    %c0_10 = arith.constant 0 : index
    %c0_11 = arith.constant 0 : index
    %c0_12 = arith.constant 0 : index
    %10 = vector.load %arg3[%c0_10, %c0_11, %c0_12] : memref<2x32x32xf32, #tpu.memory_space<vmem>>, vector<1x32x32xf32>
    %11 = vector.shape_cast %10 : vector<1x32x32xf32> to vector<32x32xf32>
    %cst_13 = arith.constant dense<0.000000e+00> : vector<32x128xf32>
    %12 = tpu.matmul %11, %3, %cst_13 {dimension_numbers = #tpu.dot_dimension_numbers<[1], [0], [0], [1], [0, 0, 1, 1], [], []>} : vector<32x32xf32>, vector<32x128xf32>, vector<32x128xf32> -> vector<32x128xf32>
    %13 = arith.addf %6, %12 : vector<32x128xf32>
    %c1_14 = arith.constant 1 : index
    %c0_15 = arith.constant 0 : index
    %c0_16 = arith.constant 0 : index
    %14 = vector.load %arg3[%c1_14, %c0_15, %c0_16] : memref<2x32x32xf32, #tpu.memory_space<vmem>>, vector<1x32x32xf32>
    %15 = vector.shape_cast %14 : vector<1x32x32xf32> to vector<32x32xf32>
    %cst_17 = arith.constant dense<0.000000e+00> : vector<32x128xf32>
    %16 = tpu.matmul %15, %9, %cst_17 {dimension_numbers = #tpu.dot_dimension_numbers<[1], [0], [0], [1], [0, 0, 1, 1], [], []>} : vector<32x32xf32>, vector<32x128xf32>, vector<32x128xf32> -> vector<32x128xf32>
    %17 = arith.addf %13, %16 : vector<32x128xf32>
    %c0_18 = arith.constant 0 : index
    %c0_19 = arith.constant 0 : index
    %18 = vector.load %arg2[%c0_18, %c0_19] : memref<1x128xf32, #tpu.memory_space<vmem>>, vector<1x128xf32>
    %19 = vector.broadcast %18 : vector<1x128xf32> to vector<32x128xf32>
    %20 = arith.addf %17, %19 : vector<32x128xf32>
    %cst_20 = arith.constant 0.000000e+00 : f32
    %21 = vector.broadcast %cst_20 : f32 to vector<32x128xf32>
    %22 = arith.maximumf %20, %21 : vector<32x128xf32>
    %c0_21 = arith.constant 0 : index
    %c0_22 = arith.constant 0 : index
    %23 = vector.load %arg12[%c0_21, %c0_22] : memref<32x128xf32, #tpu.memory_space<vmem>>, vector<32x128xf32>
    tpu.vector_store %arg12[%c0_21, %c0_22], %22 {strides = array<i32>} : memref<32x128xf32, #tpu.memory_space<vmem>>, vector<32x128xf32>,
    %c0_23 = arith.constant 0 : index
    %c0_24 = arith.constant 0 : index
    %24 = tpu.strided_load %arg12[%c0_23, %c0_24] {strides = array<i32: 2, 1>} : memref<32x128xf32, #tpu.memory_space<vmem>>, vector<16x128xf32>
    %c1_25 = arith.constant 1 : index
    %c0_26 = arith.constant 0 : index
    %25 = tpu.strided_load %arg12[%c1_25, %c0_26] {strides = array<i32: 2, 1>} : memref<32x128xf32, #tpu.memory_space<vmem>>, vector<16x128xf32>
    %26 = arith.maximumf %24, %25 : vector<16x128xf32>
    %27 = vector.extract_strided_slice %26 {offsets = [0, 0], sizes = [16, 8], strides = [1, 1]} : vector<16x128xf32> to vector<16x8xf32>
    %28 = vector.extract_strided_slice %26 {offsets = [0, 8], sizes = [16, 8], strides = [1, 1]} : vector<16x128xf32> to vector<16x8xf32>
    %29 = arith.maximumf %27, %28 : vector<16x8xf32>
    %30 = vector.extract_strided_slice %26 {offsets = [0, 16], sizes = [16, 8], strides = [1, 1]} : vector<16x128xf32> to vector<16x8xf32>
    %31 = vector.extract_strided_slice %26 {offsets = [0, 24], sizes = [16, 8], strides = [1, 1]} : vector<16x128xf32> to vector<16x8xf32>
    %32 = arith.maximumf %30, %31 : vector<16x8xf32>
    %33 = vector.extract_strided_slice %26 {offsets = [0, 32], sizes = [16, 8], strides = [1, 1]} : vector<16x128xf32> to vector<16x8xf32>
    %34 = vector.extract_strided_slice %26 {offsets = [0, 40], sizes = [16, 8], strides = [1, 1]} : vector<16x128xf32> to vector<16x8xf32>
    %35 = arith.maximumf %33, %34 : vector<16x8xf32>
    %36 = vector.extract_strided_slice %26 {offsets = [0, 48], sizes = [16, 8], strides = [1, 1]} : vector<16x128xf32> to vector<16x8xf32>
    %37 = vector.extract_strided_slice %26 {offsets = [0, 56], sizes = [16, 8], strides = [1, 1]} : vector<16x128xf32> to vector<16x8xf32>
    %38 = arith.maximumf %36, %37 : vector<16x8xf32>
    %39 = vector.extract_strided_slice %26 {offsets = [0, 64], sizes = [16, 8], strides = [1, 1]} : vector<16x128xf32> to vector<16x8xf32>
    %40 = vector.extract_strided_slice %26 {offsets = [0, 72], sizes = [16, 8], strides = [1, 1]} : vector<16x128xf32> to vector<16x8xf32>
    %41 = arith.maximumf %39, %40 : vector<16x8xf32>
    %42 = vector.extract_strided_slice %26 {offsets = [0, 80], sizes = [16, 8], strides = [1, 1]} : vector<16x128xf32> to vector<16x8xf32>
    %43 = vector.extract_strided_slice %26 {offsets = [0, 88], sizes = [16, 8], strides = [1, 1]} : vector<16x128xf32> to vector<16x8xf32>
    %44 = arith.maximumf %42, %43 : vector<16x8xf32>
    %45 = vector.extract_strided_slice %26 {offsets = [0, 96], sizes = [16, 8], strides = [1, 1]} : vector<16x128xf32> to vector<16x8xf32>
    %46 = vector.extract_strided_slice %26 {offsets = [0, 104], sizes = [16, 8], strides = [1, 1]} : vector<16x128xf32> to vector<16x8xf32>
    %47 = arith.maximumf %45, %46 : vector<16x8xf32>
    %48 = vector.extract_strided_slice %26 {offsets = [0, 112], sizes = [16, 8], strides = [1, 1]} : vector<16x128xf32> to vector<16x8xf32>
    %49 = vector.extract_strided_slice %26 {offsets = [0, 120], sizes = [16, 8], strides = [1, 1]} : vector<16x128xf32> to vector<16x8xf32>
    %50 = arith.maximumf %48, %49 : vector<16x8xf32>
    %51 = tpu.concatenate %29, %32, %35, %38, %41, %44, %47, %50 in 1 : vector<16x8xf32>, vector<16x8xf32>, vector<16x8xf32>, vector<16x8xf32>, vector<16x8xf32>, vector<16x8xf32>, vector<16x8xf32>, vector<16x8xf32> -> vector<16x64xf32>
    %c0_27 = arith.constant 0 : index
    %c0_28 = arith.constant 0 : index
    %c0_29 = arith.constant 0 : index
    %52 = vector.load %arg4[%c0_27, %c0_28, %c0_29] : memref<3x64x128xf32, #tpu.memory_space<vmem>>, vector<1x64x128xf32>
    %53 = vector.shape_cast %52 : vector<1x64x128xf32> to vector<64x128xf32>
    %cst_30 = arith.constant dense<0.000000e+00> : vector<16x128xf32>
    %54 = tpu.matmul %51, %53, %cst_30 {dimension_numbers = #tpu.dot_dimension_numbers<[1], [0], [0], [1], [0, 0, 1, 1], [], []>} : vector<16x64xf32>, vector<64x128xf32>, vector<16x128xf32> -> vector<16x128xf32>
    %c1_31 = arith.constant 1 : index
    %c0_32 = arith.constant 0 : index
    %c0_33 = arith.constant 0 : index
    %55 = vector.load %arg4[%c1_31, %c0_32, %c0_33] : memref<3x64x128xf32, #tpu.memory_space<vmem>>, vector<1x64x128xf32>
    %56 = vector.shape_cast %55 : vector<1x64x128xf32> to vector<64x128xf32>
    %cst_34 = arith.constant dense<0.000000e+00> : vector<16x128xf32>
    %57 = tpu.matmul %51, %56, %cst_34 {dimension_numbers = #tpu.dot_dimension_numbers<[1], [0], [0], [1], [0, 0, 1, 1], [], []>} : vector<16x64xf32>, vector<64x128xf32>, vector<16x128xf32> -> vector<16x128xf32>
    %c2_35 = arith.constant 2 : index
    %c0_36 = arith.constant 0 : index
    %c0_37 = arith.constant 0 : index
    %58 = vector.load %arg4[%c2_35, %c0_36, %c0_37] : memref<3x64x128xf32, #tpu.memory_space<vmem>>, vector<1x64x128xf32>
    %59 = vector.shape_cast %58 : vector<1x64x128xf32> to vector<64x128xf32>
    %cst_38 = arith.constant dense<0.000000e+00> : vector<16x128xf32>
    %60 = tpu.matmul %51, %59, %cst_38 {dimension_numbers = #tpu.dot_dimension_numbers<[1], [0], [0], [1], [0, 0, 1, 1], [], []>} : vector<16x64xf32>, vector<64x128xf32>, vector<16x128xf32> -> vector<16x128xf32>
    %c0_39 = arith.constant 0 : index
    %c0_40 = arith.constant 0 : index
    %c0_41 = arith.constant 0 : index
    %61 = vector.load %arg6[%c0_39, %c0_40, %c0_41] : memref<2x16x16xf32, #tpu.memory_space<vmem>>, vector<1x16x16xf32>
    %62 = vector.shape_cast %61 : vector<1x16x16xf32> to vector<16x16xf32>
    %cst_42 = arith.constant dense<0.000000e+00> : vector<16x128xf32>
    %63 = tpu.matmul %62, %54, %cst_42 {dimension_numbers = #tpu.dot_dimension_numbers<[1], [0], [0], [1], [0, 0, 1, 1], [], []>} : vector<16x16xf32>, vector<16x128xf32>, vector<16x128xf32> -> vector<16x128xf32>
    %64 = arith.addf %57, %63 : vector<16x128xf32>
    %c1_43 = arith.constant 1 : index
    %c0_44 = arith.constant 0 : index
    %c0_45 = arith.constant 0 : index
    %65 = vector.load %arg6[%c1_43, %c0_44, %c0_45] : memref<2x16x16xf32, #tpu.memory_space<vmem>>, vector<1x16x16xf32>
    %66 = vector.shape_cast %65 : vector<1x16x16xf32> to vector<16x16xf32>
    %cst_46 = arith.constant dense<0.000000e+00> : vector<16x128xf32>
    %67 = tpu.matmul %66, %60, %cst_46 {dimension_numbers = #tpu.dot_dimension_numbers<[1], [0], [0], [1], [0, 0, 1, 1], [], []>} : vector<16x16xf32>, vector<16x128xf32>, vector<16x128xf32> -> vector<16x128xf32>
    %68 = arith.addf %64, %67 : vector<16x128xf32>
    %c0_47 = arith.constant 0 : index
    %c0_48 = arith.constant 0 : index
    %69 = vector.load %arg5[%c0_47, %c0_48] : memref<1x128xf32, #tpu.memory_space<vmem>>, vector<1x128xf32>
    %70 = vector.broadcast %69 : vector<1x128xf32> to vector<16x128xf32>
    %71 = arith.addf %68, %70 : vector<16x128xf32>
    %cst_49 = arith.constant 0.000000e+00 : f32
    %72 = vector.broadcast %cst_49 : f32 to vector<16x128xf32>
    %73 = arith.maximumf %71, %72 : vector<16x128xf32>
    %c0_50 = arith.constant 0 : index
    %c0_51 = arith.constant 0 : index
    %74 = vector.load %arg13[%c0_50, %c0_51] : memref<16x128xf32, #tpu.memory_space<vmem>>, vector<16x128xf32>
    tpu.vector_store %arg13[%c0_50, %c0_51], %73 {strides = array<i32>} : memref<16x128xf32, #tpu.memory_space<vmem>>, vector<16x128xf32>,
    %cst_52 = arith.constant 0.000000e+00 : f32
    %75 = vector.broadcast %cst_52 : f32 to vector<2x32xf32>
    %c0_53 = arith.constant 0 : index
    %c0_54 = arith.constant 0 : index
    %76 = tpu.strided_load %arg13[%c0_53, %c0_54] {strides = array<i32: 8, 1>} : memref<16x128xf32, #tpu.memory_space<vmem>>, vector<2x128xf32>
    %c1_55 = arith.constant 1 : index
    %c0_56 = arith.constant 0 : index
    %77 = tpu.strided_load %arg13[%c1_55, %c0_56] {strides = array<i32: 8, 1>} : memref<16x128xf32, #tpu.memory_space<vmem>>, vector<2x128xf32>
    %78 = arith.maximumf %76, %77 : vector<2x128xf32>
    %79 = vector.extract_strided_slice %78 {offsets = [0, 0], sizes = [2, 16], strides = [1, 1]} : vector<2x128xf32> to vector<2x16xf32>
    %80 = vector.extract_strided_slice %78 {offsets = [0, 16], sizes = [2, 16], strides = [1, 1]} : vector<2x128xf32> to vector<2x16xf32>
    %81 = arith.maximumf %79, %80 : vector<2x16xf32>
    %82 = vector.extract_strided_slice %78 {offsets = [0, 32], sizes = [2, 16], strides = [1, 1]} : vector<2x128xf32> to vector<2x16xf32>
    %83 = vector.extract_strided_slice %78 {offsets = [0, 48], sizes = [2, 16], strides = [1, 1]} : vector<2x128xf32> to vector<2x16xf32>
    %84 = arith.maximumf %82, %83 : vector<2x16xf32>
    %85 = vector.extract_strided_slice %78 {offsets = [0, 64], sizes = [2, 16], strides = [1, 1]} : vector<2x128xf32> to vector<2x16xf32>
    %86 = vector.extract_strided_slice %78 {offsets = [0, 80], sizes = [2, 16], strides = [1, 1]} : vector<2x128xf32> to vector<2x16xf32>
    %87 = arith.maximumf %85, %86 : vector<2x16xf32>
    %88 = vector.extract_strided_slice %78 {offsets = [0, 96], sizes = [2, 16], strides = [1, 1]} : vector<2x128xf32> to vector<2x16xf32>
    %89 = vector.extract_strided_slice %78 {offsets = [0, 112], sizes = [2, 16], strides = [1, 1]} : vector<2x128xf32> to vector<2x16xf32>
    %90 = arith.maximumf %88, %89 : vector<2x16xf32>
    %91 = tpu.concatenate %81, %84, %87, %90 in 1 : vector<2x16xf32>, vector<2x16xf32>, vector<2x16xf32>, vector<2x16xf32> -> vector<2x64xf32>
    %c0_57 = arith.constant 0 : index
    %c0_58 = arith.constant 0 : index
    %c0_59 = arith.constant 0 : index
    %92 = vector.load %arg7[%c0_57, %c0_58, %c0_59] : memref<4x64x32xf32, #tpu.memory_space<vmem>>, vector<1x64x32xf32>
    %93 = vector.shape_cast %92 : vector<1x64x32xf32> to vector<64x32xf32>
    %cst_60 = arith.constant dense<0.000000e+00> : vector<2x32xf32>
    %94 = tpu.matmul %91, %93, %cst_60 {dimension_numbers = #tpu.dot_dimension_numbers<[1], [0], [0], [1], [0, 0, 1, 1], [], []>} : vector<2x64xf32>, vector<64x32xf32>, vector<2x32xf32> -> vector<2x32xf32>
    %95 = arith.addf %75, %94 : vector<2x32xf32>
    %c2_61 = arith.constant 2 : index
    %c0_62 = arith.constant 0 : index
    %96 = tpu.strided_load %arg13[%c2_61, %c0_62] {strides = array<i32: 8, 1>} : memref<16x128xf32, #tpu.memory_space<vmem>>, vector<2x128xf32>
    %c3 = arith.constant 3 : index
    %c0_63 = arith.constant 0 : index
    %97 = tpu.strided_load %arg13[%c3, %c0_63] {strides = array<i32: 8, 1>} : memref<16x128xf32, #tpu.memory_space<vmem>>, vector<2x128xf32>
    %98 = arith.maximumf %96, %97 : vector<2x128xf32>
    %99 = vector.extract_strided_slice %98 {offsets = [0, 0], sizes = [2, 16], strides = [1, 1]} : vector<2x128xf32> to vector<2x16xf32>
    %100 = vector.extract_strided_slice %98 {offsets = [0, 16], sizes = [2, 16], strides = [1, 1]} : vector<2x128xf32> to vector<2x16xf32>
    %101 = arith.maximumf %99, %100 : vector<2x16xf32>
    %102 = vector.extract_strided_slice %98 {offsets = [0, 32], sizes = [2, 16], strides = [1, 1]} : vector<2x128xf32> to vector<2x16xf32>
    %103 = vector.extract_strided_slice %98 {offsets = [0, 48], sizes = [2, 16], strides = [1, 1]} : vector<2x128xf32> to vector<2x16xf32>
    %104 = arith.maximumf %102, %103 : vector<2x16xf32>
    %105 = vector.extract_strided_slice %98 {offsets = [0, 64], sizes = [2, 16], strides = [1, 1]} : vector<2x128xf32> to vector<2x16xf32>
    %106 = vector.extract_strided_slice %98 {offsets = [0, 80], sizes = [2, 16], strides = [1, 1]} : vector<2x128xf32> to vector<2x16xf32>
    %107 = arith.maximumf %105, %106 : vector<2x16xf32>
    %108 = vector.extract_strided_slice %98 {offsets = [0, 96], sizes = [2, 16], strides = [1, 1]} : vector<2x128xf32> to vector<2x16xf32>
    %109 = vector.extract_strided_slice %98 {offsets = [0, 112], sizes = [2, 16], strides = [1, 1]} : vector<2x128xf32> to vector<2x16xf32>
    %110 = arith.maximumf %108, %109 : vector<2x16xf32>
    %111 = tpu.concatenate %101, %104, %107, %110 in 1 : vector<2x16xf32>, vector<2x16xf32>, vector<2x16xf32>, vector<2x16xf32> -> vector<2x64xf32>
    %c1_64 = arith.constant 1 : index
    %c0_65 = arith.constant 0 : index
    %c0_66 = arith.constant 0 : index
    %112 = vector.load %arg7[%c1_64, %c0_65, %c0_66] : memref<4x64x32xf32, #tpu.memory_space<vmem>>, vector<1x64x32xf32>
    %113 = vector.shape_cast %112 : vector<1x64x32xf32> to vector<64x32xf32>
    %cst_67 = arith.constant dense<0.000000e+00> : vector<2x32xf32>
    %114 = tpu.matmul %111, %113, %cst_67 {dimension_numbers = #tpu.dot_dimension_numbers<[1], [0], [0], [1], [0, 0, 1, 1], [], []>} : vector<2x64xf32>, vector<64x32xf32>, vector<2x32xf32> -> vector<2x32xf32>
    %115 = arith.addf %95, %114 : vector<2x32xf32>
    %c4 = arith.constant 4 : index
    %c0_68 = arith.constant 0 : index
    %116 = tpu.strided_load %arg13[%c4, %c0_68] {strides = array<i32: 8, 1>} : memref<16x128xf32, #tpu.memory_space<vmem>>, vector<2x128xf32>
    %c5 = arith.constant 5 : index
    %c0_69 = arith.constant 0 : index
    %117 = tpu.strided_load %arg13[%c5, %c0_69] {strides = array<i32: 8, 1>} : memref<16x128xf32, #tpu.memory_space<vmem>>, vector<2x128xf32>
    %118 = arith.maximumf %116, %117 : vector<2x128xf32>
    %119 = vector.extract_strided_slice %118 {offsets = [0, 0], sizes = [2, 16], strides = [1, 1]} : vector<2x128xf32> to vector<2x16xf32>
    %120 = vector.extract_strided_slice %118 {offsets = [0, 16], sizes = [2, 16], strides = [1, 1]} : vector<2x128xf32> to vector<2x16xf32>
    %121 = arith.maximumf %119, %120 : vector<2x16xf32>
    %122 = vector.extract_strided_slice %118 {offsets = [0, 32], sizes = [2, 16], strides = [1, 1]} : vector<2x128xf32> to vector<2x16xf32>
    %123 = vector.extract_strided_slice %118 {offsets = [0, 48], sizes = [2, 16], strides = [1, 1]} : vector<2x128xf32> to vector<2x16xf32>
    %124 = arith.maximumf %122, %123 : vector<2x16xf32>
    %125 = vector.extract_strided_slice %118 {offsets = [0, 64], sizes = [2, 16], strides = [1, 1]} : vector<2x128xf32> to vector<2x16xf32>
    %126 = vector.extract_strided_slice %118 {offsets = [0, 80], sizes = [2, 16], strides = [1, 1]} : vector<2x128xf32> to vector<2x16xf32>
    %127 = arith.maximumf %125, %126 : vector<2x16xf32>
    %128 = vector.extract_strided_slice %118 {offsets = [0, 96], sizes = [2, 16], strides = [1, 1]} : vector<2x128xf32> to vector<2x16xf32>
    %129 = vector.extract_strided_slice %118 {offsets = [0, 112], sizes = [2, 16], strides = [1, 1]} : vector<2x128xf32> to vector<2x16xf32>
    %130 = arith.maximumf %128, %129 : vector<2x16xf32>
    %131 = tpu.concatenate %121, %124, %127, %130 in 1 : vector<2x16xf32>, vector<2x16xf32>, vector<2x16xf32>, vector<2x16xf32> -> vector<2x64xf32>
    %c2_70 = arith.constant 2 : index
    %c0_71 = arith.constant 0 : index
    %c0_72 = arith.constant 0 : index
    %132 = vector.load %arg7[%c2_70, %c0_71, %c0_72] : memref<4x64x32xf32, #tpu.memory_space<vmem>>, vector<1x64x32xf32>
    %133 = vector.shape_cast %132 : vector<1x64x32xf32> to vector<64x32xf32>
    %cst_73 = arith.constant dense<0.000000e+00> : vector<2x32xf32>
    %134 = tpu.matmul %131, %133, %cst_73 {dimension_numbers = #tpu.dot_dimension_numbers<[1], [0], [0], [1], [0, 0, 1, 1], [], []>} : vector<2x64xf32>, vector<64x32xf32>, vector<2x32xf32> -> vector<2x32xf32>
    %135 = arith.addf %115, %134 : vector<2x32xf32>
    %c6 = arith.constant 6 : index
    %c0_74 = arith.constant 0 : index
    %136 = tpu.strided_load %arg13[%c6, %c0_74] {strides = array<i32: 8, 1>} : memref<16x128xf32, #tpu.memory_space<vmem>>, vector<2x128xf32>
    %c7 = arith.constant 7 : index
    %c0_75 = arith.constant 0 : index
    %137 = tpu.strided_load %arg13[%c7, %c0_75] {strides = array<i32: 8, 1>} : memref<16x128xf32, #tpu.memory_space<vmem>>, vector<2x128xf32>
    %138 = arith.maximumf %136, %137 : vector<2x128xf32>
    %139 = vector.extract_strided_slice %138 {offsets = [0, 0], sizes = [2, 16], strides = [1, 1]} : vector<2x128xf32> to vector<2x16xf32>
    %140 = vector.extract_strided_slice %138 {offsets = [0, 16], sizes = [2, 16], strides = [1, 1]} : vector<2x128xf32> to vector<2x16xf32>
    %141 = arith.maximumf %139, %140 : vector<2x16xf32>
    %142 = vector.extract_strided_slice %138 {offsets = [0, 32], sizes = [2, 16], strides = [1, 1]} : vector<2x128xf32> to vector<2x16xf32>
    %143 = vector.extract_strided_slice %138 {offsets = [0, 48], sizes = [2, 16], strides = [1, 1]} : vector<2x128xf32> to vector<2x16xf32>
    %144 = arith.maximumf %142, %143 : vector<2x16xf32>
    %145 = vector.extract_strided_slice %138 {offsets = [0, 64], sizes = [2, 16], strides = [1, 1]} : vector<2x128xf32> to vector<2x16xf32>
    %146 = vector.extract_strided_slice %138 {offsets = [0, 80], sizes = [2, 16], strides = [1, 1]} : vector<2x128xf32> to vector<2x16xf32>
    %147 = arith.maximumf %145, %146 : vector<2x16xf32>
    %148 = vector.extract_strided_slice %138 {offsets = [0, 96], sizes = [2, 16], strides = [1, 1]} : vector<2x128xf32> to vector<2x16xf32>
    %149 = vector.extract_strided_slice %138 {offsets = [0, 112], sizes = [2, 16], strides = [1, 1]} : vector<2x128xf32> to vector<2x16xf32>
    %150 = arith.maximumf %148, %149 : vector<2x16xf32>
    %151 = tpu.concatenate %141, %144, %147, %150 in 1 : vector<2x16xf32>, vector<2x16xf32>, vector<2x16xf32>, vector<2x16xf32> -> vector<2x64xf32>
    %c3_76 = arith.constant 3 : index
    %c0_77 = arith.constant 0 : index
    %c0_78 = arith.constant 0 : index
    %152 = vector.load %arg7[%c3_76, %c0_77, %c0_78] : memref<4x64x32xf32, #tpu.memory_space<vmem>>, vector<1x64x32xf32>
    %153 = vector.shape_cast %152 : vector<1x64x32xf32> to vector<64x32xf32>
    %cst_79 = arith.constant dense<0.000000e+00> : vector<2x32xf32>
    %154 = tpu.matmul %151, %153, %cst_79 {dimension_numbers = #tpu.dot_dimension_numbers<[1], [0], [0], [1], [0, 0, 1, 1], [], []>} : vector<2x64xf32>, vector<64x32xf32>, vector<2x32xf32> -> vector<2x32xf32>
    %155 = arith.addf %135, %154 : vector<2x32xf32>
    %c0_80 = arith.constant 0 : index
    %c0_81 = arith.constant 0 : index
    %156 = vector.load %arg8[%c0_80, %c0_81] : memref<1x32xf32, #tpu.memory_space<vmem>>, vector<1x32xf32>
    %157 = vector.broadcast %156 : vector<1x32xf32> to vector<2x32xf32>
    %158 = arith.addf %155, %157 : vector<2x32xf32>
    %c0_82 = arith.constant 0 : index
    %c0_83 = arith.constant 0 : index
    %159 = vector.load %arg9[%c0_82, %c0_83] : memref<32x2xf32, #tpu.memory_space<vmem>>, vector<32x2xf32>
    %cst_84 = arith.constant dense<0.000000e+00> : vector<2x2xf32>
    %160 = tpu.matmul %158, %159, %cst_84 {dimension_numbers = #tpu.dot_dimension_numbers<[1], [0], [0], [1], [0, 0, 1, 1], [], []>} : vector<2x32xf32>, vector<32x2xf32>, vector<2x2xf32> -> vector<2x2xf32>
    %c0_85 = arith.constant 0 : index
    %c0_86 = arith.constant 0 : index
    %161 = vector.load %arg10[%c0_85, %c0_86] : memref<1x2xf32, #tpu.memory_space<vmem>>, vector<1x2xf32>
    %162 = vector.broadcast %161 : vector<1x2xf32> to vector<2x2xf32>
    %163 = arith.addf %160, %162 : vector<2x2xf32>
    %c0_87 = arith.constant 0 : index
    %c0_88 = arith.constant 0 : index
    %164 = vector.load %arg11[%c0_87, %c0_88] : memref<2x2xf32, #tpu.memory_space<vmem>>, vector<2x2xf32>
    tpu.vector_store %arg11[%c0_87, %c0_88], %163 {strides = array<i32>} : memref<2x2xf32, #tpu.memory_space<vmem>>, vector<2x2xf32>,
    return
  }
}

</mosaic_0001>

<llo_original>
// kernel: net_forward.1
$region0: #{net_forward.1}
  #allocation0 [shape = 'u32[]', space=smem, size = 0x4, offset = 0x4, fixed_abs, tag = 'smem constant byte address 0x4 - core index']
  #allocation1 [shape = 'u32[144,128]{1,0:T(1,128)}', space=vmem, size = 0x12000, scoped, tag = 'internal scratch']
  #allocation2 [shape = 'f32[32,128]{1,0:T(8,128)}', space=vmem, size = 0x4000, scoped, tag = 'scratch operand']
  #allocation3 [shape = 'f32[16,128]{1,0:T(8,128)}', space=vmem, size = 0x2000, scoped, tag = 'scratch operand']
  %s0 = inlined_call_operand.vmem [shape: f32[32,16], index: 0, kind: input, shape index: {}]
  %s1 = inlined_call_operand.vmem [shape: f32[3,16,128], index: 1, kind: input, shape index: {}]
  %s2 = inlined_call_operand.vmem [shape: f32[1,128], index: 2, kind: input, shape index: {}]
  %s3 = inlined_call_operand.vmem [shape: f32[2,32,32], index: 3, kind: input, shape index: {}]
  %s4 = inlined_call_operand.vmem [shape: f32[3,64,128], index: 4, kind: input, shape index: {}]
  %s5 = inlined_call_operand.vmem [shape: f32[1,128], index: 5, kind: input, shape index: {}]
  %s6 = inlined_call_operand.vmem [shape: f32[2,16,16], index: 6, kind: input, shape index: {}]
  %s7 = inlined_call_operand.vmem [shape: f32[4,64,32], index: 7, kind: input, shape index: {}]
  %s8 = inlined_call_operand.vmem [shape: f32[1,32], index: 8, kind: input, shape index: {}]
  %s9 = inlined_call_operand.vmem [shape: f32[32,2], index: 9, kind: input, shape index: {}]
  %s10 = inlined_call_operand.vmem [shape: f32[1,2], index: 10, kind: input, shape index: {}]
  %s11 = inlined_call_operand.hbm [shape: f32[2,2], index: 11, kind: output, shape index: {}]
  %s12 = sld [smem:[#allocation0]]
  $region54: #{net_forward.1} parent=0
    _
  %s14 = ssub.s32 1, %s12
  %s15 = scalar_select 0, %s14, %s12
  $region1: #{net_forward.1} parent=0
    #allocation4 [shape = 'u8[1024]{0}', space=vmem, size = 0x400, scoped, tag = 'output window, operand 0, single buffered']
    #allocation5 [shape = 's32[1]{0}', space=sflag, size = 0x4, scoped, tag = 'scoped memory for net_forward.1']
    %16 = vsyncpa [#allocation5], 0
    // Predicated region
    $region2: #{net_forward.1} parent=1 // pred_check
      _
    $region3: #{net_forward.1} parent=1 // pred_check_branch
      %18 = sbr.rel (0) target = $region5
    $region4: #{net_forward.1} parent=1 // pred_region
      _
    $region5: #{net_forward.1} parent=1 // pred_fallthru
      _
    // Predicated region
    $region6: #{net_forward.1} parent=1 // pred_check
      _
    $region7: #{net_forward.1} parent=1 // pred_check_branch
      %20 = sbr.rel (0) target = $region9
    $region8: #{net_forward.1} parent=1 // pred_region
      _
    $region9: #{net_forward.1} parent=1 // pred_fallthru
      _
    // Predicated region
    $region10: #{net_forward.1} parent=1 // pred_check
      _
    $region11: #{net_forward.1} parent=1 // pred_check_branch
      %22 = sbr.rel (0) target = $region13
    $region12: #{net_forward.1} parent=1 // pred_region
      _
    $region13: #{net_forward.1} parent=1 // pred_fallthru
      _
    // Predicated region
    $region14: #{net_forward.1} parent=1 // pred_check
      _
    $region15: #{net_forward.1} parent=1 // pred_check_branch
      %24 = sbr.rel (0) target = $region17
    $region16: #{net_forward.1} parent=1 // pred_region
      _
    $region17: #{net_forward.1} parent=1 // pred_fallthru
      _
    // Predicated region
    $region18: #{net_forward.1} parent=1 // pred_check
      _
    $region19: #{net_forward.1} parent=1 // pred_check_branch
      %26 = sbr.rel (0) target = $region21
    $region20: #{net_forward.1} parent=1 // pred_region
      _
    $region21: #{net_forward.1} parent=1 // pred_fallthru
      _
    // Predicated region
    $region22: #{net_forward.1} parent=1 // pred_check
      _
    $region23: #{net_forward.1} parent=1 // pred_check_branch
      %28 = sbr.rel (0) target = $region25
    $region24: #{net_forward.1} parent=1 // pred_region
      _
    $region25: #{net_forward.1} parent=1 // pred_fallthru
      _
    // Predicated region
    $region26: #{net_forward.1} parent=1 // pred_check
      _
    $region27: #{net_forward.1} parent=1 // pred_check_branch
      %30 = sbr.rel (0) target = $region29
    $region28: #{net_forward.1} parent=1 // pred_region
      _
    $region29: #{net_forward.1} parent=1 // pred_fallthru
      _
    // Predicated region
    $region30: #{net_forward.1} parent=1 // pred_check
      _
    $region31: #{net_forward.1} parent=1 // pred_check_branch
      %32 = sbr.rel (0) target = $region33
    $region32: #{net_forward.1} parent=1 // pred_region
      _
    $region33: #{net_forward.1} parent=1 // pred_fallthru
      _
    // Predicated region
    $region34: #{net_forward.1} parent=1 // pred_check
      _
    $region35: #{net_forward.1} parent=1 // pred_check_branch
      %34 = sbr.rel (0) target = $region37
    $region36: #{net_forward.1} parent=1 // pred_region
      _
    $region37: #{net_forward.1} parent=1 // pred_fallthru
      _
    // Predicated region
    $region38: #{net_forward.1} parent=1 // pred_check
      _
    $region39: #{net_forward.1} parent=1 // pred_check_branch
      %36 = sbr.rel (0) target = $region41
    $region40: #{net_forward.1} parent=1 // pred_region
      _
    $region41: #{net_forward.1} parent=1 // pred_fallthru
      _
    // Predicated region
    $region42: #{net_forward.1} parent=1 // pred_check
      _
    $region43: #{net_forward.1} parent=1 // pred_check_branch
      %38 = sbr.rel (0) target = $region45
    $region44: #{net_forward.1} parent=1 // pred_region
      _
    $region45: #{net_forward.1} parent=1 // pred_fallthru
      _
    %v39 = vld [vmem:[%s0] sm:$0xff]
    %v40 = vld [vmem:[%s0 + $0x8] sm:$0xff]
    %v41 = vld [vmem:[%s0 + $0x10] sm:$0xff]
    %v42 = vld [vmem:[%s0 + $0x18] sm:$0xff]
    %v43 = vld [vmem:[%s1] sm:$0xff]
    %v44 = vld [vmem:[%s1 + $0x8] sm:$0xff]
    %vm45 = vcmask 130048
    %v47 = vsel %vm45, %v39, 0
    %v50 = vsel %vm45, %v40, 0
    %v53 = vsel %vm45, %v41, 0
    %v56 = vsel %vm45, %v42, 0
    %58 = vmatprep.subr.mxu0 0.0
    %59 = vmatpush1.msra.mxu0 0.0
    %60 = vmatprep.subr.mxu0 0.0
    %61 = vmatpush1.msra.mxu0 0.0
    %62 = vmatprep.subr.mxu0 0.0
    %63 = vmatpush1.msra.mxu0 0.0
    %64 = vmatprep.subr.mxu0 0.0
    %65 = vmatpush1.msra.mxu0 0.0
    %66 = vmatprep.subr.mxu0 0.0
    %67 = vmatpush1.msra.mxu0 0.0
    %68 = vmatprep.subr.mxu0 0.0
    %69 = vmatpush1.msra.mxu0 0.0
    %70 = vmatprep.subr.mxu0 0.0
    %71 = vmatpush1.msra.mxu0 0.0
    %72 = vmatprep.subr.mxu0 0.0
    %73 = vmatpush1.msra.mxu0 0.0
    %74 = vmatprep.subr.mxu0 0.0
    %75 = vmatpush1.msra.mxu0 0.0
    %76 = vmatprep.subr.mxu0 0.0
    %77 = vmatpush1.msra.mxu0 0.0
    %78 = vmatprep.subr.mxu0 0.0
    %79 = vmatpush1.msra.mxu0 0.0
    %80 = vmatprep.subr.mxu0 0.0
    %81 = vmatpush1.msra.mxu0 0.0
    %82 = vmatprep.subr.mxu0 0.0
    %83 = vmatpush1.msra.mxu0 0.0
    %84 = vmatprep.subr.mxu0 0.0
    %85 = vmatpush1.msra.mxu0 0.0
    %86 = vmatprep.subr.mxu0 0.0
    %87 = vmatpush1.msra.mxu0 %v44
    %88 = vmatprep.subr.mxu0 0.0
    %89 = vmatpush1.msra.mxu0 %v43
    %90 = vmatprep.subr.mxu0 0.0
    %91 = vmatpush2.msra.mxu0 0.0
    %92 = vmatprep.subr.mxu0 0.0
    %93 = vmatpush2.msra.mxu0 0.0
    %94 = vmatprep.subr.mxu0 0.0
    %95 = vmatpush2.msra.mxu0 0.0
    %96 = vmatprep.subr.mxu0 0.0
    %97 = vmatpush2.msra.mxu0 0.0
    %98 = vmatprep.subr.mxu0 0.0
    %99 = vmatpush2.msra.mxu0 0.0
    %100 = vmatprep.subr.mxu0 0.0
    %101 = vmatpush2.msra.mxu0 0.0
    %102 = vmatprep.subr.mxu0 0.0
    %103 = vmatpush2.msra.mxu0 0.0
    %104 = vmatprep.subr.mxu0 0.0
    %105 = vmatpush2.msra.mxu0 0.0
    %106 = vmatprep.subr.mxu0 0.0
    %107 = vmatpush2.msra.mxu0 0.0
    %108 = vmatprep.subr.mxu0 0.0
    %109 = vmatpush2.msra.mxu0 0.0
    %110 = vmatprep.subr.mxu0 0.0
    %111 = vmatpush2.msra.mxu0 0.0
    %112 = vmatprep.subr.mxu0 0.0
    %113 = vmatpush2.msra.mxu0 0.0
    %114 = vmatprep.subr.mxu0 0.0
    %115 = vmatpush2.msra.mxu0 0.0
    %116 = vmatprep.subr.mxu0 0.0
    %117 = vmatpush2.msra.mxu0 0.0
    %118 = vmatprep.subr.mxu0 0.0
    %119 = vmatpush2.msra.mxu0 0.0
    %120 = vmatprep.subr.mxu0 0.0
    %121 = vmatpush2.msra.mxu0 0.0
    %122 = vmatprep.mubr.f32.mxu0 0.0
    %123 = vmatmul.mubr.f32.gmra.mxu0 %v47
    %v124 = vpop.f32.mrf.mxu0
    %v125 = vadd.f32 0.0, %v124
    %v126 = vpop.f32.mrf.mxu0
    %127 = vmatprep.mubr.f32.mxu0 0.0
    %128 = vmatmul.mubr.f32.gmra.mxu0 %v50
    %v129 = vpop.f32.mrf.mxu0
    %v130 = vadd.f32 0.0, %v129
    %v131 = vpop.f32.mrf.mxu0
    %132 = vmatprep.mubr.f32.mxu0 0.0
    %133 = vmatmul.mubr.f32.gmra.mxu0 %v53
    %v134 = vpop.f32.mrf.mxu0
    %v135 = vadd.f32 0.0, %v134
    %v136 = vpop.f32.mrf.mxu0
    %137 = vmatprep.mubr.f32.mxu0 0.0
    %138 = vmatmul.mubr.f32.gmra.mxu0 %v56
    %v139 = vpop.f32.mrf.mxu0
    %v140 = vadd.f32 0.0, %v139
    %v141 = vpop.f32.mrf.mxu0
    %142 = vdwg.mxu0
    %s143 = scalar_lea.vmem %s1, 16
    %v144 = vld [vmem:[%s143] sm:$0xff]
    %v145 = vld [vmem:[%s143 + $0x8] sm:$0xff]
    %s146 = scalar_lea.vmem %s1, 32
    %v147 = vld [vmem:[%s146] sm:$0xff]
    %v148 = vld [vmem:[%s146 + $0x8] sm:$0xff]
    %149 = vmatprep.subr.mxu0 0.0
    %150 = vmatpush1.msra.mxu0 0.0
    %151 = vmatprep.subr.mxu0 0.0
    %152 = vmatpush1.msra.mxu0 0.0
    %153 = vmatprep.subr.mxu0 0.0
    %154 = vmatpush1.msra.mxu0 0.0
    %155 = vmatprep.subr.mxu0 0.0
    %156 = vmatpush1.msra.mxu0 0.0
    %157 = vmatprep.subr.mxu0 0.0
    %158 = vmatpush1.msra.mxu0 0.0
    %159 = vmatprep.subr.mxu0 0.0
    %160 = vmatpush1.msra.mxu0 0.0
    %161 = vmatprep.subr.mxu0 0.0
    %162 = vmatpush1.msra.mxu0 0.0
    %163 = vmatprep.subr.mxu0 0.0
    %164 = vmatpush1.msra.mxu0 0.0
    %165 = vmatprep.subr.mxu0 0.0
    %166 = vmatpush1.msra.mxu0 0.0
    %167 = vmatprep.subr.mxu0 0.0
    %168 = vmatpush1.msra.mxu0 0.0
    %169 = vmatprep.subr.mxu0 0.0
    %170 = vmatpush1.msra.mxu0 0.0
    %171 = vmatprep.subr.mxu0 0.0
    %172 = vmatpush1.msra.mxu0 0.0
    %173 = vmatprep.subr.mxu0 0.0
    %174 = vmatpush1.msra.mxu0 0.0
    %175 = vmatprep.subr.mxu0 0.0
    %176 = vmatpush1.msra.mxu0 0.0
    %177 = vmatprep.subr.mxu0 0.0
    %178 = vmatpush1.msra.mxu0 %v148
    %179 = vmatprep.subr.mxu0 0.0
    %180 = vmatpush1.msra.mxu0 %v147
    %181 = vmatprep.subr.mxu0 0.0
    %182 = vmatpush2.msra.mxu0 0.0
    %183 = vmatprep.subr.mxu0 0.0
    %184 = vmatpush2.msra.mxu0 0.0
    %185 = vmatprep.subr.mxu0 0.0
    %186 = vmatpush2.msra.mxu0 0.0
    %187 = vmatprep.subr.mxu0 0.0
    %188 = vmatpush2.msra.mxu0 0.0
    %189 = vmatprep.subr.mxu0 0.0
    %190 = vmatpush2.msra.mxu0 0.0
    %191 = vmatprep.subr.mxu0 0.0
    %192 = vmatpush2.msra.mxu0 0.0
    %193 = vmatprep.subr.mxu0 0.0
    %194 = vmatpush2.msra.mxu0 0.0
    %195 = vmatprep.subr.mxu0 0.0
    %196 = vmatpush2.msra.mxu0 0.0
    %197 = vmatprep.subr.mxu0 0.0
    %198 = vmatpush2.msra.mxu0 0.0
    %199 = vmatprep.subr.mxu0 0.0
    %200 = vmatpush2.msra.mxu0 0.0
    %201 = vmatprep.subr.mxu0 0.0
    %202 = vmatpush2.msra.mxu0 0.0
    %203 = vmatprep.subr.mxu0 0.0
    %204 = vmatpush2.msra.mxu0 0.0
    %205 = vmatprep.subr.mxu0 0.0
    %206 = vmatpush2.msra.mxu0 0.0
    %207 = vmatprep.subr.mxu0 0.0
    %208 = vmatpush2.msra.mxu0 0.0
    %209 = vmatprep.subr.mxu0 0.0
    %210 = vmatpush2.msra.mxu0 0.0
    %211 = vmatprep.subr.mxu0 0.0
    %212 = vmatpush2.msra.mxu0 0.0
    %213 = vmatprep.mubr.f32.mxu0 0.0
    %214 = vmatmul.mubr.f32.gmra.mxu0 %v47
    %v215 = vpop.f32.mrf.mxu0
    %v216 = vadd.f32 0.0, %v215
    %v217 = vpop.f32.mrf.mxu0
    %218 = vmatprep.mubr.f32.mxu0 0.0
    %219 = vmatmul.mubr.f32.gmra.mxu0 %v50
    %v220 = vpop.f32.mrf.mxu0
    %v221 = vadd.f32 0.0, %v220
    %v222 = vpop.f32.mrf.mxu0
    %223 = vmatprep.mubr.f32.mxu0 0.0
    %224 = vmatmul.mubr.f32.gmra.mxu0 %v53
    %v225 = vpop.f32.mrf.mxu0
    %v226 = vadd.f32 0.0, %v225
    %v227 = vpop.f32.mrf.mxu0
    %228 = vmatprep.mubr.f32.mxu0 0.0
    %229 = vmatmul.mubr.f32.gmra.mxu0 %v56
    %v230 = vpop.f32.mrf.mxu0
    %v231 = vadd.f32 0.0, %v230
    %v232 = vpop.f32.mrf.mxu0
    %233 = vdwg.mxu0
    %v234 = vld [vmem:[%s3] sm:$0xff]
    %v235 = vld [vmem:[%s3 + $0x8] sm:$0xff]
    %v236 = vld [vmem:[%s3 + $0x10] sm:$0xff]
    %v237 = vld [vmem:[%s3 + $0x18] sm:$0xff]
    %vm238 = vcmask 261120
    %v240 = vsel %vm238, %v234, 0
    %v243 = vsel %vm238, %v235, 0
    %v246 = vsel %vm238, %v236, 0
    %v249 = vsel %vm238, %v237, 0
    %251 = vmatprep.subr.mxu0 0.0
    %252 = vmatpush1.msra.mxu0 0.0
    %253 = vmatprep.subr.mxu0 0.0
    %254 = vmatpush1.msra.mxu0 0.0
    %255 = vmatprep.subr.mxu0 0.0
    %256 = vmatpush1.msra.mxu0 0.0
    %257 = vmatprep.subr.mxu0 0.0
    %258 = vmatpush1.msra.mxu0 0.0
    %259 = vmatprep.subr.mxu0 0.0
    %260 = vmatpush1.msra.mxu0 0.0
    %261 = vmatprep.subr.mxu0 0.0
    %262 = vmatpush1.msra.mxu0 0.0
    %263 = vmatprep.subr.mxu0 0.0
    %264 = vmatpush1.msra.mxu0 0.0
    %265 = vmatprep.subr.mxu0 0.0
    %266 = vmatpush1.msra.mxu0 0.0
    %267 = vmatprep.subr.mxu0 0.0
    %268 = vmatpush1.msra.mxu0 0.0
    %269 = vmatprep.subr.mxu0 0.0
    %270 = vmatpush1.msra.mxu0 0.0
    %271 = vmatprep.subr.mxu0 0.0
    %272 = vmatpush1.msra.mxu0 0.0
    %273 = vmatprep.subr.mxu0 0.0
    %274 = vmatpush1.msra.mxu0 0.0
    %275 = vmatprep.subr.mxu0 0.0
    %276 = vmatpush1.msra.mxu0 %v140
    %277 = vmatprep.subr.mxu0 0.0
    %278 = vmatpush1.msra.mxu0 %v135
    %279 = vmatprep.subr.mxu0 0.0
    %280 = vmatpush1.msra.mxu0 %v130
    %281 = vmatprep.subr.mxu0 0.0
    %282 = vmatpush1.msra.mxu0 %v125
    %283 = vmatprep.subr.mxu0 0.0
    %284 = vmatpush2.msra.mxu0 0.0
    %285 = vmatprep.subr.mxu0 0.0
    %286 = vmatpush2.msra.mxu0 0.0
    %287 = vmatprep.subr.mxu0 0.0
    %288 = vmatpush2.msra.mxu0 0.0
    %289 = vmatprep.subr.mxu0 0.0
    %290 = vmatpush2.msra.mxu0 0.0
    %291 = vmatprep.subr.mxu0 0.0
    %292 = vmatpush2.msra.mxu0 0.0
    %293 = vmatprep.subr.mxu0 0.0
    %294 = vmatpush2.msra.mxu0 0.0
    %295 = vmatprep.subr.mxu0 0.0
    %296 = vmatpush2.msra.mxu0 0.0
    %297 = vmatprep.subr.mxu0 0.0
    %298 = vmatpush2.msra.mxu0 0.0
    %299 = vmatprep.subr.mxu0 0.0
    %300 = vmatpush2.msra.mxu0 0.0
    %301 = vmatprep.subr.mxu0 0.0
    %302 = vmatpush2.msra.mxu0 0.0
    %303 = vmatprep.subr.mxu0 0.0
    %304 = vmatpush2.msra.mxu0 0.0
    %305 = vmatprep.subr.mxu0 0.0
    %306 = vmatpush2.msra.mxu0 0.0
    %307 = vmatprep.subr.mxu0 0.0
    %308 = vmatpush2.msra.mxu0 0.0
    %309 = vmatprep.subr.mxu0 0.0
    %310 = vmatpush2.msra.mxu0 0.0
    %311 = vmatprep.subr.mxu0 0.0
    %312 = vmatpush2.msra.mxu0 0.0
    %313 = vmatprep.subr.mxu0 0.0
    %314 = vmatpush2.msra.mxu0 0.0
    %315 = vmatprep.mubr.f32.mxu0 0.0
    %316 = vmatmul.mubr.f32.gmra.mxu0 %v240
    %v317 = vpop.f32.mrf.mxu0
    %v318 = vadd.f32 0.0, %v317
    %v319 = vpop.f32.mrf.mxu0
    %320 = vmatprep.mubr.f32.mxu0 0.0
    %321 = vmatmul.mubr.f32.gmra.mxu0 %v243
    %v322 = vpop.f32.mrf.mxu0
    %v323 = vadd.f32 0.0, %v322
    %v324 = vpop.f32.mrf.mxu0
    %325 = vmatprep.mubr.f32.mxu0 0.0
    %326 = vmatmul.mubr.f32.gmra.mxu0 %v246
    %v327 = vpop.f32.mrf.mxu0
    %v328 = vadd.f32 0.0, %v327
    %v329 = vpop.f32.mrf.mxu0
    %330 = vmatprep.mubr.f32.mxu0 0.0
    %331 = vmatmul.mubr.f32.gmra.mxu0 %v249
    %v332 = vpop.f32.mrf.mxu0
    %v333 = vadd.f32 0.0, %v332
    %v334 = vpop.f32.mrf.mxu0
    %335 = vdwg.mxu0
    %336 = vmatprep.subr.mxu0 0.0
    %337 = vmatpush1.msra.mxu0 0.0
    %338 = vmatprep.subr.mxu0 0.0
    %339 = vmatpush1.msra.mxu0 0.0
    %340 = vmatprep.subr.mxu0 0.0
    %341 = vmatpush1.msra.mxu0 0.0
    %342 = vmatprep.subr.mxu0 0.0
    %343 = vmatpush1.msra.mxu0 0.0
    %344 = vmatprep.subr.mxu0 0.0
    %345 = vmatpush1.msra.mxu0 0.0
    %346 = vmatprep.subr.mxu0 0.0
    %347 = vmatpush1.msra.mxu0 0.0
    %348 = vmatprep.subr.mxu0 0.0
    %349 = vmatpush1.msra.mxu0 0.0
    %350 = vmatprep.subr.mxu0 0.0
    %351 = vmatpush1.msra.mxu0 0.0
    %352 = vmatprep.subr.mxu0 0.0
    %353 = vmatpush1.msra.mxu0 0.0
    %354 = vmatprep.subr.mxu0 0.0
    %355 = vmatpush1.msra.mxu0 0.0
    %356 = vmatprep.subr.mxu0 0.0
    %357 = vmatpush1.msra.mxu0 0.0
    %358 = vmatprep.subr.mxu0 0.0
    %359 = vmatpush1.msra.mxu0 0.0
    %360 = vmatprep.subr.mxu0 0.0
    %361 = vmatpush1.msra.mxu0 0.0
    %362 = vmatprep.subr.mxu0 0.0
    %363 = vmatpush1.msra.mxu0 0.0
    %364 = vmatprep.subr.mxu0 0.0
    %365 = vmatpush1.msra.mxu0 %v145
    %366 = vmatprep.subr.mxu0 0.0
    %367 = vmatpush1.msra.mxu0 %v144
    %368 = vmatprep.subr.mxu0 0.0
    %369 = vmatpush2.msra.mxu0 0.0
    %370 = vmatprep.subr.mxu0 0.0
    %371 = vmatpush2.msra.mxu0 0.0
    %372 = vmatprep.subr.mxu0 0.0
    %373 = vmatpush2.msra.mxu0 0.0
    %374 = vmatprep.subr.mxu0 0.0
    %375 = vmatpush2.msra.mxu0 0.0
    %376 = vmatprep.subr.mxu0 0.0
    %377 = vmatpush2.msra.mxu0 0.0
    %378 = vmatprep.subr.mxu0 0.0
    %379 = vmatpush2.msra.mxu0 0.0
    %380 = vmatprep.subr.mxu0 0.0
    %381 = vmatpush2.msra.mxu0 0.0
    %382 = vmatprep.subr.mxu0 0.0
    %383 = vmatpush2.msra.mxu0 0.0
    %384 = vmatprep.subr.mxu0 0.0
    %385 = vmatpush2.msra.mxu0 0.0
    %386 = vmatprep.subr.mxu0 0.0
    %387 = vmatpush2.msra.mxu0 0.0
    %388 = vmatprep.subr.mxu0 0.0
    %389 = vmatpush2.msra.mxu0 0.0
    %390 = vmatprep.subr.mxu0 0.0
    %391 = vmatpush2.msra.mxu0 0.0
    %392 = vmatprep.subr.mxu0 0.0
    %393 = vmatpush2.msra.mxu0 0.0
    %394 = vmatprep.subr.mxu0 0.0
    %395 = vmatpush2.msra.mxu0 0.0
    %396 = vmatprep.subr.mxu0 0.0
    %397 = vmatpush2.msra.mxu0 0.0
    %398 = vmatprep.subr.mxu0 0.0
    %399 = vmatpush2.msra.mxu0 0.0
    %400 = vmatprep.mubr.f32.mxu0 0.0
    %401 = vmatmul.mubr.f32.gmra.mxu0 %v47
    %v402 = vpop.f32.mrf.mxu0
    %v403 = vadd.f32 %v318, %v402
    %v404 = vpop.f32.mrf.mxu0
    %405 = vmatprep.mubr.f32.mxu0 0.0
    %406 = vmatmul.mubr.f32.gmra.mxu0 %v50
    %v407 = vpop.f32.mrf.mxu0
    %v408 = vadd.f32 %v323, %v407
    %v409 = vpop.f32.mrf.mxu0
    %410 = vmatprep.mubr.f32.mxu0 0.0
    %411 = vmatmul.mubr.f32.gmra.mxu0 %v53
    %v412 = vpop.f32.mrf.mxu0
    %v413 = vadd.f32 %v328, %v412
    %v414 = vpop.f32.mrf.mxu0
    %415 = vmatprep.mubr.f32.mxu0 0.0
    %416 = vmatmul.mubr.f32.gmra.mxu0 %v56
    %v417 = vpop.f32.mrf.mxu0
    %v418 = vadd.f32 %v333, %v417
    %v419 = vpop.f32.mrf.mxu0
    %420 = vdwg.mxu0
    %s421 = scalar_lea.vmem %s3, 32
    %v422 = vld [vmem:[%s421] sm:$0xff]
    %v423 = vld [vmem:[%s421 + $0x8] sm:$0xff]
    %v424 = vld [vmem:[%s421 + $0x10] sm:$0xff]
    %v425 = vld [vmem:[%s421 + $0x18] sm:$0xff]
    %v427 = vsel %vm238, %v422, 0
    %v430 = vsel %vm238, %v423, 0
    %v433 = vsel %vm238, %v424, 0
    %v436 = vsel %vm238, %v425, 0
    %438 = vmatprep.subr.mxu0 0.0
    %439 = vmatpush1.msra.mxu0 0.0
    %440 = vmatprep.subr.mxu0 0.0
    %441 = vmatpush1.msra.mxu0 0.0
    %442 = vmatprep.subr.mxu0 0.0
    %443 = vmatpush1.msra.mxu0 0.0
    %444 = vmatprep.subr.mxu0 0.0
    %445 = vmatpush1.msra.mxu0 0.0
    %446 = vmatprep.subr.mxu0 0.0
    %447 = vmatpush1.msra.mxu0 0.0
    %448 = vmatprep.subr.mxu0 0.0
    %449 = vmatpush1.msra.mxu0 0.0
    %450 = vmatprep.subr.mxu0 0.0
    %451 = vmatpush1.msra.mxu0 0.0
    %452 = vmatprep.subr.mxu0 0.0
    %453 = vmatpush1.msra.mxu0 0.0
    %454 = vmatprep.subr.mxu0 0.0
    %455 = vmatpush1.msra.mxu0 0.0
    %456 = vmatprep.subr.mxu0 0.0
    %457 = vmatpush1.msra.mxu0 0.0
    %458 = vmatprep.subr.mxu0 0.0
    %459 = vmatpush1.msra.mxu0 0.0
    %460 = vmatprep.subr.mxu0 0.0
    %461 = vmatpush1.msra.mxu0 0.0
    %462 = vmatprep.subr.mxu0 0.0
    %463 = vmatpush1.msra.mxu0 %v231
    %464 = vmatprep.subr.mxu0 0.0
    %465 = vmatpush1.msra.mxu0 %v226
    %466 = vmatprep.subr.mxu0 0.0
    %467 = vmatpush1.msra.mxu0 %v221
    %468 = vmatprep.subr.mxu0 0.0
    %469 = vmatpush1.msra.mxu0 %v216
    %470 = vmatprep.subr.mxu0 0.0
    %471 = vmatpush2.msra.mxu0 0.0
    %472 = vmatprep.subr.mxu0 0.0
    %473 = vmatpush2.msra.mxu0 0.0
    %474 = vmatprep.subr.mxu0 0.0
    %475 = vmatpush2.msra.mxu0 0.0
    %476 = vmatprep.subr.mxu0 0.0
    %477 = vmatpush2.msra.mxu0 0.0
    %478 = vmatprep.subr.mxu0 0.0
    %479 = vmatpush2.msra.mxu0 0.0
    %480 = vmatprep.subr.mxu0 0.0
    %481 = vmatpush2.msra.mxu0 0.0
    %482 = vmatprep.subr.mxu0 0.0
    %483 = vmatpush2.msra.mxu0 0.0
    %484 = vmatprep.subr.mxu0 0.0
    %485 = vmatpush2.msra.mxu0 0.0
    %486 = vmatprep.subr.mxu0 0.0
    %487 = vmatpush2.msra.mxu0 0.0
    %488 = vmatprep.subr.mxu0 0.0
    %489 = vmatpush2.msra.mxu0 0.0
    %490 = vmatprep.subr.mxu0 0.0
    %491 = vmatpush2.msra.mxu0 0.0
    %492 = vmatprep.subr.mxu0 0.0
    %493 = vmatpush2.msra.mxu0 0.0
    %494 = vmatprep.subr.mxu0 0.0
    %495 = vmatpush2.msra.mxu0 0.0
    %496 = vmatprep.subr.mxu0 0.0
    %497 = vmatpush2.msra.mxu0 0.0
    %498 = vmatprep.subr.mxu0 0.0
    %499 = vmatpush2.msra.mxu0 0.0
    %500 = vmatprep.subr.mxu0 0.0
    %501 = vmatpush2.msra.mxu0 0.0
    %502 = vmatprep.mubr.f32.mxu0 0.0
    %503 = vmatmul.mubr.f32.gmra.mxu0 %v427
    %v504 = vpop.f32.mrf.mxu0
    %v505 = vadd.f32 0.0, %v504
    %v506 = vpop.f32.mrf.mxu0
    %507 = vmatprep.mubr.f32.mxu0 0.0
    %508 = vmatmul.mubr.f32.gmra.mxu0 %v430
    %v509 = vpop.f32.mrf.mxu0
    %v510 = vadd.f32 0.0, %v509
    %v511 = vpop.f32.mrf.mxu0
    %512 = vmatprep.mubr.f32.mxu0 0.0
    %513 = vmatmul.mubr.f32.gmra.mxu0 %v433
    %v514 = vpop.f32.mrf.mxu0
    %v515 = vadd.f32 0.0, %v514
    %v516 = vpop.f32.mrf.mxu0
    %517 = vmatprep.mubr.f32.mxu0 0.0
    %518 = vmatmul.mubr.f32.gmra.mxu0 %v436
    %v519 = vpop.f32.mrf.mxu0
    %v520 = vadd.f32 0.0, %v519
    %v521 = vpop.f32.mrf.mxu0
    %522 = vdwg.mxu0
    %v523 = vadd.f32 %v403, %v505
    %v524 = vadd.f32 %v408, %v510
    %v525 = vadd.f32 %v413, %v515
    %v526 = vadd.f32 %v418, %v520
    %v527 = vld [vmem:[%s2] sm:$0x1]
    %v529 = vlaneseq
    %v530 = vshrl.u32 %v529, 7
    %v531 = vsub.s32 0, %v530
    %v532 = vrot.slane %v527, %v531
    %v534 = vadd.f32 %v523, %v532
    %v535 = vadd.f32 %v524, %v532
    %v536 = vadd.f32 %v525, %v532
    %v537 = vadd.f32 %v526, %v532
    %v538 = vmax.f32 %v534, 0.0
    %v539 = vmax.f32 %v535, 0.0
    %v540 = vmax.f32 %v536, 0.0
    %v541 = vmax.f32 %v537, 0.0
    %542 = vst [vmem:[#allocation2] sm:$0xff] %v538
    %543 = vst [vmem:[#allocation2 + $0x8] sm:$0xff] %v539
    %544 = vst [vmem:[#allocation2 + $0x10] sm:$0xff] %v540
    %545 = vst [vmem:[#allocation2 + $0x18] sm:$0xff] %v541
    %v546 = vld [vmem:[#allocation2] ss:$2 sm:$0xff]
    %s547 = scalar_lea.vmem [#allocation2], 16
    %v548 = vld [vmem:[%s547] ss:$2 sm:$0xff]
    %s549 = scalar_lea.vmem [#allocation2], 1
    %v550 = vld [vmem:[%s549] ss:$2 sm:$0xff]
    %s551 = scalar_lea.vmem [#allocation2], 17
    %v552 = vld [vmem:[%s551] ss:$2 sm:$0xff]
    %v553 = vmax.f32 %v546, %v550
    %v554 = vmax.f32 %v548, %v552
    %557 = vrot.lane.b32.xlu0 %v553, 120
    %v558 = vpop.permute.xlu0 %557
    %559 = vrot.lane.b32.xlu0 %v554, 120
    %v560 = vpop.permute.xlu0 %559
    %v563 = vmax.f32 %v553, %v558
    %v564 = vmax.f32 %v554, %v560
    %567 = vrot.lane.b32.xlu0 %v563, 120
    %v568 = vpop.permute.xlu0 %567
    %569 = vrot.lane.b32.xlu0 %v564, 120
    %v570 = vpop.permute.xlu0 %569
    %573 = vrot.lane.b32.xlu0 %v563, 112
    %v574 = vpop.permute.xlu0 %573
    %575 = vrot.lane.b32.xlu0 %v564, 112
    %v576 = vpop.permute.xlu0 %575
    %579 = vrot.lane.b32.xlu0 %v563, 104
    %v580 = vpop.permute.xlu0 %579
    %581 = vrot.lane.b32.xlu0 %v564, 104
    %v582 = vpop.permute.xlu0 %581
    %585 = vrot.lane.b32.xlu0 %v563, 96
    %v586 = vpop.permute.xlu0 %585
    %587 = vrot.lane.b32.xlu0 %v564, 96
    %v588 = vpop.permute.xlu0 %587
    %591 = vrot.lane.b32.xlu0 %v563, 88
    %v592 = vpop.permute.xlu0 %591
    %593 = vrot.lane.b32.xlu0 %v564, 88
    %v594 = vpop.permute.xlu0 %593
    %597 = vrot.lane.b32.xlu0 %v563, 80
    %v598 = vpop.permute.xlu0 %597
    %599 = vrot.lane.b32.xlu0 %v564, 80
    %v600 = vpop.permute.xlu0 %599
    %603 = vrot.lane.b32.xlu0 %v563, 72
    %v604 = vpop.permute.xlu0 %603
    %605 = vrot.lane.b32.xlu0 %v564, 72
    %v606 = vpop.permute.xlu0 %605
    %vm609 = vcmask 64512
    %v610 = vsel %vm609, %v563, %v568
    %v611 = vsel %vm609, %v564, %v570
    %v612 = vsel %vm45, %v610, %v574
    %v613 = vsel %vm45, %v611, %v576
    %vm614 = vcmask 195584
    %v615 = vsel %vm614, %v612, %v580
    %v616 = vsel %vm614, %v613, %v582
    %v617 = vsel %vm238, %v615, %v586
    %v618 = vsel %vm238, %v616, %v588
    %vm619 = vcmask 326656
    %v620 = vsel %vm619, %v617, %v592
    %v621 = vsel %vm619, %v618, %v594
    %vm622 = vcmask 392192
    %v623 = vsel %vm622, %v620, %v598
    %v624 = vsel %vm622, %v621, %v600
    %vm625 = vcmask 457728
    %v626 = vsel %vm625, %v623, %v604
    %v627 = vsel %vm625, %v624, %v606
    %v628 = vld [vmem:[%s4] sm:$0xff]
    %v629 = vld [vmem:[%s4 + $0x8] sm:$0xff]
    %v630 = vld [vmem:[%s4 + $0x10] sm:$0xff]
    %v631 = vld [vmem:[%s4 + $0x18] sm:$0xff]
    %v632 = vld [vmem:[%s4 + $0x20] sm:$0xff]
    %v633 = vld [vmem:[%s4 + $0x28] sm:$0xff]
    %v634 = vld [vmem:[%s4 + $0x30] sm:$0xff]
    %v635 = vld [vmem:[%s4 + $0x38] sm:$0xff]
    %vm636 = vcmask 523264
    %v638 = vsel %vm636, %v626, 0
    %v641 = vsel %vm636, %v627, 0
    %643 = vmatprep.subr.mxu0 0.0
    %644 = vmatpush1.msra.mxu0 0.0
    %645 = vmatprep.subr.mxu0 0.0
    %646 = vmatpush1.msra.mxu0 0.0
    %647 = vmatprep.subr.mxu0 0.0
    %648 = vmatpush1.msra.mxu0 0.0
    %649 = vmatprep.subr.mxu0 0.0
    %650 = vmatpush1.msra.mxu0 0.0
    %651 = vmatprep.subr.mxu0 0.0
    %652 = vmatpush1.msra.mxu0 0.0
    %653 = vmatprep.subr.mxu0 0.0
    %654 = vmatpush1.msra.mxu0 0.0
    %655 = vmatprep.subr.mxu0 0.0
    %656 = vmatpush1.msra.mxu0 0.0
    %657 = vmatprep.subr.mxu0 0.0
    %658 = vmatpush1.msra.mxu0 0.0
    %659 = vmatprep.subr.mxu0 0.0
    %660 = vmatpush1.msra.mxu0 %v635
    %661 = vmatprep.subr.mxu0 0.0
    %662 = vmatpush1.msra.mxu0 %v634
    %663 = vmatprep.subr.mxu0 0.0
    %664 = vmatpush1.msra.mxu0 %v633
    %665 = vmatprep.subr.mxu0 0.0
    %666 = vmatpush1.msra.mxu0 %v632
    %667 = vmatprep.subr.mxu0 0.0
    %668 = vmatpush1.msra.mxu0 %v631
    %669 = vmatprep.subr.mxu0 0.0
    %670 = vmatpush1.msra.mxu0 %v630
    %671 = vmatprep.subr.mxu0 0.0
    %672 = vmatpush1.msra.mxu0 %v629
    %673 = vmatprep.subr.mxu0 0.0
    %674 = vmatpush1.msra.mxu0 %v628
    %675 = vmatprep.subr.mxu0 0.0
    %676 = vmatpush2.msra.mxu0 0.0
    %677 = vmatprep.subr.mxu0 0.0
    %678 = vmatpush2.msra.mxu0 0.0
    %679 = vmatprep.subr.mxu0 0.0
    %680 = vmatpush2.msra.mxu0 0.0
    %681 = vmatprep.subr.mxu0 0.0
    %682 = vmatpush2.msra.mxu0 0.0
    %683 = vmatprep.subr.mxu0 0.0
    %684 = vmatpush2.msra.mxu0 0.0
    %685 = vmatprep.subr.mxu0 0.0
    %686 = vmatpush2.msra.mxu0 0.0
    %687 = vmatprep.subr.mxu0 0.0
    %688 = vmatpush2.msra.mxu0 0.0
    %689 = vmatprep.subr.mxu0 0.0
    %690 = vmatpush2.msra.mxu0 0.0
    %691 = vmatprep.subr.mxu0 0.0
    %692 = vmatpush2.msra.mxu0 0.0
    %693 = vmatprep.subr.mxu0 0.0
    %694 = vmatpush2.msra.mxu0 0.0
    %695 = vmatprep.subr.mxu0 0.0
    %696 = vmatpush2.msra.mxu0 0.0
    %697 = vmatprep.subr.mxu0 0.0
    %698 = vmatpush2.msra.mxu0 0.0
    %699 = vmatprep.subr.mxu0 0.0
    %700 = vmatpush2.msra.mxu0 0.0
    %701 = vmatprep.subr.mxu0 0.0
    %702 = vmatpush2.msra.mxu0 0.0
    %703 = vmatprep.subr.mxu0 0.0
    %704 = vmatpush2.msra.mxu0 0.0
    %705 = vmatprep.subr.mxu0 0.0
    %706 = vmatpush2.msra.mxu0 0.0
    %707 = vmatprep.mubr.f32.mxu0 0.0
    %708 = vmatmul.mubr.f32.gmra.mxu0 %v638
    %v709 = vpop.f32.mrf.mxu0
    %v710 = vadd.f32 0.0, %v709
    %v711 = vpop.f32.mrf.mxu0
    %712 = vmatprep.mubr.f32.mxu0 0.0
    %713 = vmatmul.mubr.f32.gmra.mxu0 %v641
    %v714 = vpop.f32.mrf.mxu0
    %v715 = vadd.f32 0.0, %v714
    %v716 = vpop.f32.mrf.mxu0
    %717 = vdwg.mxu0
    %s718 = scalar_lea.vmem %s4, 64
    %v719 = vld [vmem:[%s718] sm:$0xff]
    %v720 = vld [vmem:[%s718 + $0x8] sm:$0xff]
    %v721 = vld [vmem:[%s718 + $0x10] sm:$0xff]
    %v722 = vld [vmem:[%s718 + $0x18] sm:$0xff]
    %v723 = vld [vmem:[%s718 + $0x20] sm:$0xff]
    %v724 = vld [vmem:[%s718 + $0x28] sm:$0xff]
    %v725 = vld [vmem:[%s718 + $0x30] sm:$0xff]
    %v726 = vld [vmem:[%s718 + $0x38] sm:$0xff]
    %s727 = scalar_lea.vmem %s4, 128
    %v728 = vld [vmem:[%s727] sm:$0xff]
    %v729 = vld [vmem:[%s727 + $0x8] sm:$0xff]
    %v730 = vld [vmem:[%s727 + $0x10] sm:$0xff]
    %v731 = vld [vmem:[%s727 + $0x18] sm:$0xff]
    %v732 = vld [vmem:[%s727 + $0x20] sm:$0xff]
    %v733 = vld [vmem:[%s727 + $0x28] sm:$0xff]
    %v734 = vld [vmem:[%s727 + $0x30] sm:$0xff]
    %v735 = vld [vmem:[%s727 + $0x38] sm:$0xff]
    %736 = vmatprep.subr.mxu0 0.0
    %737 = vmatpush1.msra.mxu0 0.0
    %738 = vmatprep.subr.mxu0 0.0
    %739 = vmatpush1.msra.mxu0 0.0
    %740 = vmatprep.subr.mxu0 0.0
    %741 = vmatpush1.msra.mxu0 0.0
    %742 = vmatprep.subr.mxu0 0.0
    %743 = vmatpush1.msra.mxu0 0.0
    %744 = vmatprep.subr.mxu0 0.0
    %745 = vmatpush1.msra.mxu0 0.0
    %746 = vmatprep.subr.mxu0 0.0
    %747 = vmatpush1.msra.mxu0 0.0
    %748 = vmatprep.subr.mxu0 0.0
    %749 = vmatpush1.msra.mxu0 0.0
    %750 = vmatprep.subr.mxu0 0.0
    %751 = vmatpush1.msra.mxu0 0.0
    %752 = vmatprep.subr.mxu0 0.0
    %753 = vmatpush1.msra.mxu0 %v735
    %754 = vmatprep.subr.mxu0 0.0
    %755 = vmatpush1.msra.mxu0 %v734
    %756 = vmatprep.subr.mxu0 0.0
    %757 = vmatpush1.msra.mxu0 %v733
    %758 = vmatprep.subr.mxu0 0.0
    %759 = vmatpush1.msra.mxu0 %v732
    %760 = vmatprep.subr.mxu0 0.0
    %761 = vmatpush1.msra.mxu0 %v731
    %762 = vmatprep.subr.mxu0 0.0
    %763 = vmatpush1.msra.mxu0 %v730
    %764 = vmatprep.subr.mxu0 0.0
    %765 = vmatpush1.msra.mxu0 %v729
    %766 = vmatprep.subr.mxu0 0.0
    %767 = vmatpush1.msra.mxu0 %v728
    %768 = vmatprep.subr.mxu0 0.0
    %769 = vmatpush2.msra.mxu0 0.0
    %770 = vmatprep.subr.mxu0 0.0
    %771 = vmatpush2.msra.mxu0 0.0
    %772 = vmatprep.subr.mxu0 0.0
    %773 = vmatpush2.msra.mxu0 0.0
    %774 = vmatprep.subr.mxu0 0.0
    %775 = vmatpush2.msra.mxu0 0.0
    %776 = vmatprep.subr.mxu0 0.0
    %777 = vmatpush2.msra.mxu0 0.0
    %778 = vmatprep.subr.mxu0 0.0
    %779 = vmatpush2.msra.mxu0 0.0
    %780 = vmatprep.subr.mxu0 0.0
    %781 = vmatpush2.msra.mxu0 0.0
    %782 = vmatprep.subr.mxu0 0.0
    %783 = vmatpush2.msra.mxu0 0.0
    %784 = vmatprep.subr.mxu0 0.0
    %785 = vmatpush2.msra.mxu0 0.0
    %786 = vmatprep.subr.mxu0 0.0
    %787 = vmatpush2.msra.mxu0 0.0
    %788 = vmatprep.subr.mxu0 0.0
    %789 = vmatpush2.msra.mxu0 0.0
    %790 = vmatprep.subr.mxu0 0.0
    %791 = vmatpush2.msra.mxu0 0.0
    %792 = vmatprep.subr.mxu0 0.0
    %793 = vmatpush2.msra.mxu0 0.0
    %794 = vmatprep.subr.mxu0 0.0
    %795 = vmatpush2.msra.mxu0 0.0
    %796 = vmatprep.subr.mxu0 0.0
    %797 = vmatpush2.msra.mxu0 0.0
    %798 = vmatprep.subr.mxu0 0.0
    %799 = vmatpush2.msra.mxu0 0.0
    %800 = vmatprep.mubr.f32.mxu0 0.0
    %801 = vmatmul.mubr.f32.gmra.mxu0 %v638
    %v802 = vpop.f32.mrf.mxu0
    %v803 = vadd.f32 0.0, %v802
    %v804 = vpop.f32.mrf.mxu0
    %805 = vmatprep.mubr.f32.mxu0 0.0
    %806 = vmatmul.mubr.f32.gmra.mxu0 %v641
    %v807 = vpop.f32.mrf.mxu0
    %v808 = vadd.f32 0.0, %v807
    %v809 = vpop.f32.mrf.mxu0
    %810 = vdwg.mxu0
    %v811 = vld [vmem:[%s6] sm:$0xff]
    %v812 = vld [vmem:[%s6 + $0x8] sm:$0xff]
    %v814 = vsel %vm45, %v811, 0
    %v817 = vsel %vm45, %v812, 0
    %819 = vmatprep.subr.mxu0 0.0
    %820 = vmatpush1.msra.mxu0 0.0
    %821 = vmatprep.subr.mxu0 0.0
    %822 = vmatpush1.msra.mxu0 0.0
    %823 = vmatprep.subr.mxu0 0.0
    %824 = vmatpush1.msra.mxu0 0.0
    %825 = vmatprep.subr.mxu0 0.0
    %826 = vmatpush1.msra.mxu0 0.0
    %827 = vmatprep.subr.mxu0 0.0
    %828 = vmatpush1.msra.mxu0 0.0
    %829 = vmatprep.subr.mxu0 0.0
    %830 = vmatpush1.msra.mxu0 0.0
    %831 = vmatprep.subr.mxu0 0.0
    %832 = vmatpush1.msra.mxu0 0.0
    %833 = vmatprep.subr.mxu0 0.0
    %834 = vmatpush1.msra.mxu0 0.0
    %835 = vmatprep.subr.mxu0 0.0
    %836 = vmatpush1.msra.mxu0 0.0
    %837 = vmatprep.subr.mxu0 0.0
    %838 = vmatpush1.msra.mxu0 0.0
    %839 = vmatprep.subr.mxu0 0.0
    %840 = vmatpush1.msra.mxu0 0.0
    %841 = vmatprep.subr.mxu0 0.0
    %842 = vmatpush1.msra.mxu0 0.0
    %843 = vmatprep.subr.mxu0 0.0
    %844 = vmatpush1.msra.mxu0 0.0
    %845 = vmatprep.subr.mxu0 0.0
    %846 = vmatpush1.msra.mxu0 0.0
    %847 = vmatprep.subr.mxu0 0.0
    %848 = vmatpush1.msra.mxu0 %v715
    %849 = vmatprep.subr.mxu0 0.0
    %850 = vmatpush1.msra.mxu0 %v710
    %851 = vmatprep.subr.mxu0 0.0
    %852 = vmatpush2.msra.mxu0 0.0
    %853 = vmatprep.subr.mxu0 0.0
    %854 = vmatpush2.msra.mxu0 0.0
    %855 = vmatprep.subr.mxu0 0.0
    %856 = vmatpush2.msra.mxu0 0.0
    %857 = vmatprep.subr.mxu0 0.0
    %858 = vmatpush2.msra.mxu0 0.0
    %859 = vmatprep.subr.mxu0 0.0
    %860 = vmatpush2.msra.mxu0 0.0
    %861 = vmatprep.subr.mxu0 0.0
    %862 = vmatpush2.msra.mxu0 0.0
    %863 = vmatprep.subr.mxu0 0.0
    %864 = vmatpush2.msra.mxu0 0.0
    %865 = vmatprep.subr.mxu0 0.0
    %866 = vmatpush2.msra.mxu0 0.0
    %867 = vmatprep.subr.mxu0 0.0
    %868 = vmatpush2.msra.mxu0 0.0
    %869 = vmatprep.subr.mxu0 0.0
    %870 = vmatpush2.msra.mxu0 0.0
    %871 = vmatprep.subr.mxu0 0.0
    %872 = vmatpush2.msra.mxu0 0.0
    %873 = vmatprep.subr.mxu0 0.0
    %874 = vmatpush2.msra.mxu0 0.0
    %875 = vmatprep.subr.mxu0 0.0
    %876 = vmatpush2.msra.mxu0 0.0
    %877 = vmatprep.subr.mxu0 0.0
    %878 = vmatpush2.msra.mxu0 0.0
    %879 = vmatprep.subr.mxu0 0.0
    %880 = vmatpush2.msra.mxu0 0.0
    %881 = vmatprep.subr.mxu0 0.0
    %882 = vmatpush2.msra.mxu0 0.0
    %883 = vmatprep.mubr.f32.mxu0 0.0
    %884 = vmatmul.mubr.f32.gmra.mxu0 %v814
    %v885 = vpop.f32.mrf.mxu0
    %v886 = vadd.f32 0.0, %v885
    %v887 = vpop.f32.mrf.mxu0
    %888 = vmatprep.mubr.f32.mxu0 0.0
    %889 = vmatmul.mubr.f32.gmra.mxu0 %v817
    %v890 = vpop.f32.mrf.mxu0
    %v891 = vadd.f32 0.0, %v890
    %v892 = vpop.f32.mrf.mxu0
    %893 = vdwg.mxu0
    %894 = vmatprep.subr.mxu0 0.0
    %895 = vmatpush1.msra.mxu0 0.0
    %896 = vmatprep.subr.mxu0 0.0
    %897 = vmatpush1.msra.mxu0 0.0
    %898 = vmatprep.subr.mxu0 0.0
    %899 = vmatpush1.msra.mxu0 0.0
    %900 = vmatprep.subr.mxu0 0.0
    %901 = vmatpush1.msra.mxu0 0.0
    %902 = vmatprep.subr.mxu0 0.0
    %903 = vmatpush1.msra.mxu0 0.0
    %904 = vmatprep.subr.mxu0 0.0
    %905 = vmatpush1.msra.mxu0 0.0
    %906 = vmatprep.subr.mxu0 0.0
    %907 = vmatpush1.msra.mxu0 0.0
    %908 = vmatprep.subr.mxu0 0.0
    %909 = vmatpush1.msra.mxu0 0.0
    %910 = vmatprep.subr.mxu0 0.0
    %911 = vmatpush1.msra.mxu0 %v726
    %912 = vmatprep.subr.mxu0 0.0
    %913 = vmatpush1.msra.mxu0 %v725
    %914 = vmatprep.subr.mxu0 0.0
    %915 = vmatpush1.msra.mxu0 %v724
    %916 = vmatprep.subr.mxu0 0.0
    %917 = vmatpush1.msra.mxu0 %v723
    %918 = vmatprep.subr.mxu0 0.0
    %919 = vmatpush1.msra.mxu0 %v722
    %920 = vmatprep.subr.mxu0 0.0
    %921 = vmatpush1.msra.mxu0 %v721
    %922 = vmatprep.subr.mxu0 0.0
    %923 = vmatpush1.msra.mxu0 %v720
    %924 = vmatprep.subr.mxu0 0.0
    %925 = vmatpush1.msra.mxu0 %v719
    %926 = vmatprep.subr.mxu0 0.0
    %927 = vmatpush2.msra.mxu0 0.0
    %928 = vmatprep.subr.mxu0 0.0
    %929 = vmatpush2.msra.mxu0 0.0
    %930 = vmatprep.subr.mxu0 0.0
    %931 = vmatpush2.msra.mxu0 0.0
    %932 = vmatprep.subr.mxu0 0.0
    %933 = vmatpush2.msra.mxu0 0.0
    %934 = vmatprep.subr.mxu0 0.0
    %935 = vmatpush2.msra.mxu0 0.0
    %936 = vmatprep.subr.mxu0 0.0
    %937 = vmatpush2.msra.mxu0 0.0
    %938 = vmatprep.subr.mxu0 0.0
    %939 = vmatpush2.msra.mxu0 0.0
    %940 = vmatprep.subr.mxu0 0.0
    %941 = vmatpush2.msra.mxu0 0.0
    %942 = vmatprep.subr.mxu0 0.0
    %943 = vmatpush2.msra.mxu0 0.0
    %944 = vmatprep.subr.mxu0 0.0
    %945 = vmatpush2.msra.mxu0 0.0
    %946 = vmatprep.subr.mxu0 0.0
    %947 = vmatpush2.msra.mxu0 0.0
    %948 = vmatprep.subr.mxu0 0.0
    %949 = vmatpush2.msra.mxu0 0.0
    %950 = vmatprep.subr.mxu0 0.0
    %951 = vmatpush2.msra.mxu0 0.0
    %952 = vmatprep.subr.mxu0 0.0
    %953 = vmatpush2.msra.mxu0 0.0
    %954 = vmatprep.subr.mxu0 0.0
    %955 = vmatpush2.msra.mxu0 0.0
    %956 = vmatprep.subr.mxu0 0.0
    %957 = vmatpush2.msra.mxu0 0.0
    %958 = vmatprep.mubr.f32.mxu0 0.0
    %959 = vmatmul.mubr.f32.gmra.mxu0 %v638
    %v960 = vpop.f32.mrf.mxu0
    %v961 = vadd.f32 %v886, %v960
    %v962 = vpop.f32.mrf.mxu0
    %963 = vmatprep.mubr.f32.mxu0 0.0
    %964 = vmatmul.mubr.f32.gmra.mxu0 %v641
    %v965 = vpop.f32.mrf.mxu0
    %v966 = vadd.f32 %v891, %v965
    %v967 = vpop.f32.mrf.mxu0
    %968 = vdwg.mxu0
    %s969 = scalar_lea.vmem %s6, 16
    %v970 = vld [vmem:[%s969] sm:$0xff]
    %v971 = vld [vmem:[%s969 + $0x8] sm:$0xff]
    %v973 = vsel %vm45, %v970, 0
    %v976 = vsel %vm45, %v971, 0
    %978 = vmatprep.subr.mxu0 0.0
    %979 = vmatpush1.msra.mxu0 0.0
    %980 = vmatprep.subr.mxu0 0.0
    %981 = vmatpush1.msra.mxu0 0.0
    %982 = vmatprep.subr.mxu0 0.0
    %983 = vmatpush1.msra.mxu0 0.0
    %984 = vmatprep.subr.mxu0 0.0
    %985 = vmatpush1.msra.mxu0 0.0
    %986 = vmatprep.subr.mxu0 0.0
    %987 = vmatpush1.msra.mxu0 0.0
    %988 = vmatprep.subr.mxu0 0.0
    %989 = vmatpush1.msra.mxu0 0.0
    %990 = vmatprep.subr.mxu0 0.0
    %991 = vmatpush1.msra.mxu0 0.0
    %992 = vmatprep.subr.mxu0 0.0
    %993 = vmatpush1.msra.mxu0 0.0
    %994 = vmatprep.subr.mxu0 0.0
    %995 = vmatpush1.msra.mxu0 0.0
    %996 = vmatprep.subr.mxu0 0.0
    %997 = vmatpush1.msra.mxu0 0.0
    %998 = vmatprep.subr.mxu0 0.0
    %999 = vmatpush1.msra.mxu0 0.0
    %1000 = vmatprep.subr.mxu0 0.0
    %1001 = vmatpush1.msra.mxu0 0.0
    %1002 = vmatprep.subr.mxu0 0.0
    %1003 = vmatpush1.msra.mxu0 0.0
    %1004 = vmatprep.subr.mxu0 0.0
    %1005 = vmatpush1.msra.mxu0 0.0
    %1006 = vmatprep.subr.mxu0 0.0
    %1007 = vmatpush1.msra.mxu0 %v808
    %1008 = vmatprep.subr.mxu0 0.0
    %1009 = vmatpush1.msra.mxu0 %v803
    %1010 = vmatprep.subr.mxu0 0.0
    %1011 = vmatpush2.msra.mxu0 0.0
    %1012 = vmatprep.subr.mxu0 0.0
    %1013 = vmatpush2.msra.mxu0 0.0
    %1014 = vmatprep.subr.mxu0 0.0
    %1015 = vmatpush2.msra.mxu0 0.0
    %1016 = vmatprep.subr.mxu0 0.0
    %1017 = vmatpush2.msra.mxu0 0.0
    %1018 = vmatprep.subr.mxu0 0.0
    %1019 = vmatpush2.msra.mxu0 0.0
    %1020 = vmatprep.subr.mxu0 0.0
    %1021 = vmatpush2.msra.mxu0 0.0
    %1022 = vmatprep.subr.mxu0 0.0
    %1023 = vmatpush2.msra.mxu0 0.0
    %1024 = vmatprep.subr.mxu0 0.0
    %1025 = vmatpush2.msra.mxu0 0.0
    %1026 = vmatprep.subr.mxu0 0.0
    %1027 = vmatpush2.msra.mxu0 0.0
    %1028 = vmatprep.subr.mxu0 0.0
    %1029 = vmatpush2.msra.mxu0 0.0
    %1030 = vmatprep.subr.mxu0 0.0
    %1031 = vmatpush2.msra.mxu0 0.0
    %1032 = vmatprep.subr.mxu0 0.0
    %1033 = vmatpush2.msra.mxu0 0.0
    %1034 = vmatprep.subr.mxu0 0.0
    %1035 = vmatpush2.msra.mxu0 0.0
    %1036 = vmatprep.subr.mxu0 0.0
    %1037 = vmatpush2.msra.mxu0 0.0
    %1038 = vmatprep.subr.mxu0 0.0
    %1039 = vmatpush2.msra.mxu0 0.0
    %1040 = vmatprep.subr.mxu0 0.0
    %1041 = vmatpush2.msra.mxu0 0.0
    %1042 = vmatprep.mubr.f32.mxu0 0.0
    %1043 = vmatmul.mubr.f32.gmra.mxu0 %v973
    %v1044 = vpop.f32.mrf.mxu0
    %v1045 = vadd.f32 0.0, %v1044
    %v1046 = vpop.f32.mrf.mxu0
    %1047 = vmatprep.mubr.f32.mxu0 0.0
    %1048 = vmatmul.mubr.f32.gmra.mxu0 %v976
    %v1049 = vpop.f32.mrf.mxu0
    %v1050 = vadd.f32 0.0, %v1049
    %v1051 = vpop.f32.mrf.mxu0
    %1052 = vdwg.mxu0
    %v1053 = vadd.f32 %v961, %v1045
    %v1054 = vadd.f32 %v966, %v1050
    %v1055 = vld [vmem:[%s5] sm:$0x1]
    %v1057 = vlaneseq
    %v1058 = vshrl.u32 %v1057, 7
    %v1059 = vsub.s32 0, %v1058
    %v1060 = vrot.slane %v1055, %v1059
    %v1062 = vadd.f32 %v1053, %v1060
    %v1063 = vadd.f32 %v1054, %v1060
    %v1064 = vmax.f32 %v1062, 0.0
    %v1065 = vmax.f32 %v1063, 0.0
    %1066 = vst [vmem:[#allocation3] sm:$0xff] %v1064
    %1067 = vst [vmem:[#allocation3 + $0x8] sm:$0xff] %v1065
    %v1068 = vld [vmem:[#allocation3] ss:$8 sm:$0x3]
    %s1069 = scalar_lea.vmem [#allocation3], 1
    %v1070 = vld [vmem:[%s1069] ss:$8 sm:$0x3]
    %v1071 = vmax.f32 %v1068, %v1070
    %1073 = vrot.lane.b32.xlu0 %v1071, 112
    %v1074 = vpop.permute.xlu0 %1073
    %v1076 = vmax.f32 %v1071, %v1074
    %1078 = vrot.lane.b32.xlu0 %v1076, 112
    %v1079 = vpop.permute.xlu0 %1078
    %1081 = vrot.lane.b32.xlu0 %v1076, 96
    %v1082 = vpop.permute.xlu0 %1081
    %1084 = vrot.lane.b32.xlu0 %v1076, 80
    %v1085 = vpop.permute.xlu0 %1084
    %v1087 = vsel %vm45, %v1076, %v1079
    %v1088 = vsel %vm238, %v1087, %v1082
    %v1089 = vsel %vm622, %v1088, %v1085
    %v1090 = vld [vmem:[%s7] sm:$0xff]
    %v1091 = vld [vmem:[%s7 + $0x8] sm:$0xff]
    %v1092 = vld [vmem:[%s7 + $0x10] sm:$0xff]
    %v1093 = vld [vmem:[%s7 + $0x18] sm:$0xff]
    %v1094 = vld [vmem:[%s7 + $0x20] sm:$0xff]
    %v1095 = vld [vmem:[%s7 + $0x28] sm:$0xff]
    %v1096 = vld [vmem:[%s7 + $0x30] sm:$0xff]
    %v1097 = vld [vmem:[%s7 + $0x38] sm:$0xff]
    %s1098 = scalar_lea.vmem [#allocation3], 2
    %v1099 = vld [vmem:[%s1098] ss:$8 sm:$0x3]
    %s1100 = scalar_lea.vmem [#allocation3], 3
    %v1101 = vld [vmem:[%s1100] ss:$8 sm:$0x3]
    %v1102 = vmax.f32 %v1099, %v1101
    %1104 = vrot.lane.b32.xlu0 %v1102, 112
    %v1105 = vpop.permute.xlu0 %1104
    %v1107 = vmax.f32 %v1102, %v1105
    %1109 = vrot.lane.b32.xlu0 %v1107, 112
    %v1110 = vpop.permute.xlu0 %1109
    %1112 = vrot.lane.b32.xlu0 %v1107, 96
    %v1113 = vpop.permute.xlu0 %1112
    %1115 = vrot.lane.b32.xlu0 %v1107, 80
    %v1116 = vpop.permute.xlu0 %1115
    %v1118 = vsel %vm45, %v1107, %v1110
    %v1119 = vsel %vm238, %v1118, %v1113
    %v1120 = vsel %vm622, %v1119, %v1116
    %s1121 = scalar_lea.vmem %s7, 64
    %v1122 = vld [vmem:[%s1121] sm:$0xff]
    %v1123 = vld [vmem:[%s1121 + $0x8] sm:$0xff]
    %v1124 = vld [vmem:[%s1121 + $0x10] sm:$0xff]
    %v1125 = vld [vmem:[%s1121 + $0x18] sm:$0xff]
    %v1126 = vld [vmem:[%s1121 + $0x20] sm:$0xff]
    %v1127 = vld [vmem:[%s1121 + $0x28] sm:$0xff]
    %v1128 = vld [vmem:[%s1121 + $0x30] sm:$0xff]
    %v1129 = vld [vmem:[%s1121 + $0x38] sm:$0xff]
    %v1131 = vsel %vm636, %v1120, 0
    %1133 = vmatprep.subr.mxu0 0.0
    %1134 = vmatpush1.msra.mxu0 0.0
    %1135 = vmatprep.subr.mxu0 0.0
    %1136 = vmatpush1.msra.mxu0 0.0
    %1137 = vmatprep.subr.mxu0 0.0
    %1138 = vmatpush1.msra.mxu0 0.0
    %1139 = vmatprep.subr.mxu0 0.0
    %1140 = vmatpush1.msra.mxu0 0.0
    %1141 = vmatprep.subr.mxu0 0.0
    %1142 = vmatpush1.msra.mxu0 0.0
    %1143 = vmatprep.subr.mxu0 0.0
    %1144 = vmatpush1.msra.mxu0 0.0
    %1145 = vmatprep.subr.mxu0 0.0
    %1146 = vmatpush1.msra.mxu0 0.0
    %1147 = vmatprep.subr.mxu0 0.0
    %1148 = vmatpush1.msra.mxu0 0.0
    %1149 = vmatprep.subr.mxu0 0.0
    %1150 = vmatpush1.msra.mxu0 %v1129
    %1151 = vmatprep.subr.mxu0 0.0
    %1152 = vmatpush1.msra.mxu0 %v1128
    %1153 = vmatprep.subr.mxu0 0.0
    %1154 = vmatpush1.msra.mxu0 %v1127
    %1155 = vmatprep.subr.mxu0 0.0
    %1156 = vmatpush1.msra.mxu0 %v1126
    %1157 = vmatprep.subr.mxu0 0.0
    %1158 = vmatpush1.msra.mxu0 %v1125
    %1159 = vmatprep.subr.mxu0 0.0
    %1160 = vmatpush1.msra.mxu0 %v1124
    %1161 = vmatprep.subr.mxu0 0.0
    %1162 = vmatpush1.msra.mxu0 %v1123
    %1163 = vmatprep.subr.mxu0 0.0
    %1164 = vmatpush1.msra.mxu0 %v1122
    %1165 = vmatprep.subr.mxu0 0.0
    %1166 = vmatpush2.msra.mxu0 0.0
    %1167 = vmatprep.subr.mxu0 0.0
    %1168 = vmatpush2.msra.mxu0 0.0
    %1169 = vmatprep.subr.mxu0 0.0
    %1170 = vmatpush2.msra.mxu0 0.0
    %1171 = vmatprep.subr.mxu0 0.0
    %1172 = vmatpush2.msra.mxu0 0.0
    %1173 = vmatprep.subr.mxu0 0.0
    %1174 = vmatpush2.msra.mxu0 0.0
    %1175 = vmatprep.subr.mxu0 0.0
    %1176 = vmatpush2.msra.mxu0 0.0
    %1177 = vmatprep.subr.mxu0 0.0
    %1178 = vmatpush2.msra.mxu0 0.0
    %1179 = vmatprep.subr.mxu0 0.0
    %1180 = vmatpush2.msra.mxu0 0.0
    %1181 = vmatprep.subr.mxu0 0.0
    %1182 = vmatpush2.msra.mxu0 0.0
    %1183 = vmatprep.subr.mxu0 0.0
    %1184 = vmatpush2.msra.mxu0 0.0
    %1185 = vmatprep.subr.mxu0 0.0
    %1186 = vmatpush2.msra.mxu0 0.0
    %1187 = vmatprep.subr.mxu0 0.0
    %1188 = vmatpush2.msra.mxu0 0.0
    %1189 = vmatprep.subr.mxu0 0.0
    %1190 = vmatpush2.msra.mxu0 0.0
    %1191 = vmatprep.subr.mxu0 0.0
    %1192 = vmatpush2.msra.mxu0 0.0
    %1193 = vmatprep.subr.mxu0 0.0
    %1194 = vmatpush2.msra.mxu0 0.0
    %1195 = vmatprep.subr.mxu0 0.0
    %1196 = vmatpush2.msra.mxu0 0.0
    %1197 = vmatprep.mubr.f32.mxu0 0.0
    %1198 = vmatmul.mubr.f32.gmra.mxu0 %v1131
    %v1199 = vpop.f32.mrf.mxu0
    %v1200 = vadd.f32 0.0, %v1199
    %v1201 = vpop.f32.mrf.mxu0
    %1202 = vdwg.mxu0
    %v1204 = vsel %vm636, %v1089, 0
    %1206 = vmatprep.subr.mxu0 0.0
    %1207 = vmatpush1.msra.mxu0 0.0
    %1208 = vmatprep.subr.mxu0 0.0
    %1209 = vmatpush1.msra.mxu0 0.0
    %1210 = vmatprep.subr.mxu0 0.0
    %1211 = vmatpush1.msra.mxu0 0.0
    %1212 = vmatprep.subr.mxu0 0.0
    %1213 = vmatpush1.msra.mxu0 0.0
    %1214 = vmatprep.subr.mxu0 0.0
    %1215 = vmatpush1.msra.mxu0 0.0
    %1216 = vmatprep.subr.mxu0 0.0
    %1217 = vmatpush1.msra.mxu0 0.0
    %1218 = vmatprep.subr.mxu0 0.0
    %1219 = vmatpush1.msra.mxu0 0.0
    %1220 = vmatprep.subr.mxu0 0.0
    %1221 = vmatpush1.msra.mxu0 0.0
    %1222 = vmatprep.subr.mxu0 0.0
    %1223 = vmatpush1.msra.mxu0 %v1097
    %1224 = vmatprep.subr.mxu0 0.0
    %1225 = vmatpush1.msra.mxu0 %v1096
    %1226 = vmatprep.subr.mxu0 0.0
    %1227 = vmatpush1.msra.mxu0 %v1095
    %1228 = vmatprep.subr.mxu0 0.0
    %1229 = vmatpush1.msra.mxu0 %v1094
    %1230 = vmatprep.subr.mxu0 0.0
    %1231 = vmatpush1.msra.mxu0 %v1093
    %1232 = vmatprep.subr.mxu0 0.0
    %1233 = vmatpush1.msra.mxu0 %v1092
    %1234 = vmatprep.subr.mxu0 0.0
    %1235 = vmatpush1.msra.mxu0 %v1091
    %1236 = vmatprep.subr.mxu0 0.0
    %1237 = vmatpush1.msra.mxu0 %v1090
    %1238 = vmatprep.subr.mxu0 0.0
    %1239 = vmatpush2.msra.mxu0 0.0
    %1240 = vmatprep.subr.mxu0 0.0
    %1241 = vmatpush2.msra.mxu0 0.0
    %1242 = vmatprep.subr.mxu0 0.0
    %1243 = vmatpush2.msra.mxu0 0.0
    %1244 = vmatprep.subr.mxu0 0.0
    %1245 = vmatpush2.msra.mxu0 0.0
    %1246 = vmatprep.subr.mxu0 0.0
    %1247 = vmatpush2.msra.mxu0 0.0
    %1248 = vmatprep.subr.mxu0 0.0
    %1249 = vmatpush2.msra.mxu0 0.0
    %1250 = vmatprep.subr.mxu0 0.0
    %1251 = vmatpush2.msra.mxu0 0.0
    %1252 = vmatprep.subr.mxu0 0.0
    %1253 = vmatpush2.msra.mxu0 0.0
    %1254 = vmatprep.subr.mxu0 0.0
    %1255 = vmatpush2.msra.mxu0 0.0
    %1256 = vmatprep.subr.mxu0 0.0
    %1257 = vmatpush2.msra.mxu0 0.0
    %1258 = vmatprep.subr.mxu0 0.0
    %1259 = vmatpush2.msra.mxu0 0.0
    %1260 = vmatprep.subr.mxu0 0.0
    %1261 = vmatpush2.msra.mxu0 0.0
    %1262 = vmatprep.subr.mxu0 0.0
    %1263 = vmatpush2.msra.mxu0 0.0
    %1264 = vmatprep.subr.mxu0 0.0
    %1265 = vmatpush2.msra.mxu0 0.0
    %1266 = vmatprep.subr.mxu0 0.0
    %1267 = vmatpush2.msra.mxu0 0.0
    %1268 = vmatprep.subr.mxu0 0.0
    %1269 = vmatpush2.msra.mxu0 0.0
    %1270 = vmatprep.mubr.f32.mxu0 0.0
    %1271 = vmatmul.mubr.f32.gmra.mxu0 %v1204
    %v1272 = vpop.f32.mrf.mxu0
    %v1273 = vadd.f32 %v1200, %v1272
    %v1274 = vpop.f32.mrf.mxu0
    %1275 = vdwg.mxu0
    %s1276 = scalar_lea.vmem [#allocation3], 4
    %v1277 = vld [vmem:[%s1276] ss:$8 sm:$0x3]
    %s1278 = scalar_lea.vmem [#allocation3], 5
    %v1279 = vld [vmem:[%s1278] ss:$8 sm:$0x3]
    %v1280 = vmax.f32 %v1277, %v1279
    %1282 = vrot.lane.b32.xlu0 %v1280, 112
    %v1283 = vpop.permute.xlu0 %1282
    %v1285 = vmax.f32 %v1280, %v1283
    %1287 = vrot.lane.b32.xlu0 %v1285, 112
    %v1288 = vpop.permute.xlu0 %1287
    %1290 = vrot.lane.b32.xlu0 %v1285, 96
    %v1291 = vpop.permute.xlu0 %1290
    %1293 = vrot.lane.b32.xlu0 %v1285, 80
    %v1294 = vpop.permute.xlu0 %1293
    %v1296 = vsel %vm45, %v1285, %v1288
    %v1297 = vsel %vm238, %v1296, %v1291
    %v1298 = vsel %vm622, %v1297, %v1294
    %s1299 = scalar_lea.vmem %s7, 128
    %v1300 = vld [vmem:[%s1299] sm:$0xff]
    %v1301 = vld [vmem:[%s1299 + $0x8] sm:$0xff]
    %v1302 = vld [vmem:[%s1299 + $0x10] sm:$0xff]
    %v1303 = vld [vmem:[%s1299 + $0x18] sm:$0xff]
    %v1304 = vld [vmem:[%s1299 + $0x20] sm:$0xff]
    %v1305 = vld [vmem:[%s1299 + $0x28] sm:$0xff]
    %v1306 = vld [vmem:[%s1299 + $0x30] sm:$0xff]
    %v1307 = vld [vmem:[%s1299 + $0x38] sm:$0xff]
    %v1309 = vsel %vm636, %v1298, 0
    %1311 = vmatprep.subr.mxu0 0.0
    %1312 = vmatpush1.msra.mxu0 0.0
    %1313 = vmatprep.subr.mxu0 0.0
    %1314 = vmatpush1.msra.mxu0 0.0
    %1315 = vmatprep.subr.mxu0 0.0
    %1316 = vmatpush1.msra.mxu0 0.0
    %1317 = vmatprep.subr.mxu0 0.0
    %1318 = vmatpush1.msra.mxu0 0.0
    %1319 = vmatprep.subr.mxu0 0.0
    %1320 = vmatpush1.msra.mxu0 0.0
    %1321 = vmatprep.subr.mxu0 0.0
    %1322 = vmatpush1.msra.mxu0 0.0
    %1323 = vmatprep.subr.mxu0 0.0
    %1324 = vmatpush1.msra.mxu0 0.0
    %1325 = vmatprep.subr.mxu0 0.0
    %1326 = vmatpush1.msra.mxu0 0.0
    %1327 = vmatprep.subr.mxu0 0.0
    %1328 = vmatpush1.msra.mxu0 %v1307
    %1329 = vmatprep.subr.mxu0 0.0
    %1330 = vmatpush1.msra.mxu0 %v1306
    %1331 = vmatprep.subr.mxu0 0.0
    %1332 = vmatpush1.msra.mxu0 %v1305
    %1333 = vmatprep.subr.mxu0 0.0
    %1334 = vmatpush1.msra.mxu0 %v1304
    %1335 = vmatprep.subr.mxu0 0.0
    %1336 = vmatpush1.msra.mxu0 %v1303
    %1337 = vmatprep.subr.mxu0 0.0
    %1338 = vmatpush1.msra.mxu0 %v1302
    %1339 = vmatprep.subr.mxu0 0.0
    %1340 = vmatpush1.msra.mxu0 %v1301
    %1341 = vmatprep.subr.mxu0 0.0
    %1342 = vmatpush1.msra.mxu0 %v1300
    %1343 = vmatprep.subr.mxu0 0.0
    %1344 = vmatpush2.msra.mxu0 0.0
    %1345 = vmatprep.subr.mxu0 0.0
    %1346 = vmatpush2.msra.mxu0 0.0
    %1347 = vmatprep.subr.mxu0 0.0
    %1348 = vmatpush2.msra.mxu0 0.0
    %1349 = vmatprep.subr.mxu0 0.0
    %1350 = vmatpush2.msra.mxu0 0.0
    %1351 = vmatprep.subr.mxu0 0.0
    %1352 = vmatpush2.msra.mxu0 0.0
    %1353 = vmatprep.subr.mxu0 0.0
    %1354 = vmatpush2.msra.mxu0 0.0
    %1355 = vmatprep.subr.mxu0 0.0
    %1356 = vmatpush2.msra.mxu0 0.0
    %1357 = vmatprep.subr.mxu0 0.0
    %1358 = vmatpush2.msra.mxu0 0.0
    %1359 = vmatprep.subr.mxu0 0.0
    %1360 = vmatpush2.msra.mxu0 0.0
    %1361 = vmatprep.subr.mxu0 0.0
    %1362 = vmatpush2.msra.mxu0 0.0
    %1363 = vmatprep.subr.mxu0 0.0
    %1364 = vmatpush2.msra.mxu0 0.0
    %1365 = vmatprep.subr.mxu0 0.0
    %1366 = vmatpush2.msra.mxu0 0.0
    %1367 = vmatprep.subr.mxu0 0.0
    %1368 = vmatpush2.msra.mxu0 0.0
    %1369 = vmatprep.subr.mxu0 0.0
    %1370 = vmatpush2.msra.mxu0 0.0
    %1371 = vmatprep.subr.mxu0 0.0
    %1372 = vmatpush2.msra.mxu0 0.0
    %1373 = vmatprep.subr.mxu0 0.0
    %1374 = vmatpush2.msra.mxu0 0.0
    %1375 = vmatprep.mubr.f32.mxu0 0.0
    %1376 = vmatmul.mubr.f32.gmra.mxu0 %v1309
    %v1377 = vpop.f32.mrf.mxu0
    %v1378 = vadd.f32 0.0, %v1377
    %v1379 = vpop.f32.mrf.mxu0
    %1380 = vdwg.mxu0
    %v1381 = vadd.f32 %v1273, %v1378
    %s1382 = scalar_lea.vmem [#allocation3], 6
    %v1383 = vld [vmem:[%s1382] ss:$8 sm:$0x3]
    %s1384 = scalar_lea.vmem [#allocation3], 7
    %v1385 = vld [vmem:[%s1384] ss:$8 sm:$0x3]
    %v1386 = vmax.f32 %v1383, %v1385
    %1388 = vrot.lane.b32.xlu0 %v1386, 112
    %v1389 = vpop.permute.xlu0 %1388
    %v1391 = vmax.f32 %v1386, %v1389
    %1393 = vrot.lane.b32.xlu0 %v1391, 112
    %v1394 = vpop.permute.xlu0 %1393
    %1396 = vrot.lane.b32.xlu0 %v1391, 96
    %v1397 = vpop.permute.xlu0 %1396
    %1399 = vrot.lane.b32.xlu0 %v1391, 80
    %v1400 = vpop.permute.xlu0 %1399
    %v1402 = vsel %vm45, %v1391, %v1394
    %v1403 = vsel %vm238, %v1402, %v1397
    %v1404 = vsel %vm622, %v1403, %v1400
    %s1405 = scalar_lea.vmem %s7, 192
    %v1406 = vld [vmem:[%s1405] sm:$0xff]
    %v1407 = vld [vmem:[%s1405 + $0x8] sm:$0xff]
    %v1408 = vld [vmem:[%s1405 + $0x10] sm:$0xff]
    %v1409 = vld [vmem:[%s1405 + $0x18] sm:$0xff]
    %v1410 = vld [vmem:[%s1405 + $0x20] sm:$0xff]
    %v1411 = vld [vmem:[%s1405 + $0x28] sm:$0xff]
    %v1412 = vld [vmem:[%s1405 + $0x30] sm:$0xff]
    %v1413 = vld [vmem:[%s1405 + $0x38] sm:$0xff]
    %v1415 = vsel %vm636, %v1404, 0
    %1417 = vmatprep.subr.mxu0 0.0
    %1418 = vmatpush1.msra.mxu0 0.0
    %1419 = vmatprep.subr.mxu0 0.0
    %1420 = vmatpush1.msra.mxu0 0.0
    %1421 = vmatprep.subr.mxu0 0.0
    %1422 = vmatpush1.msra.mxu0 0.0
    %1423 = vmatprep.subr.mxu0 0.0
    %1424 = vmatpush1.msra.mxu0 0.0
    %1425 = vmatprep.subr.mxu0 0.0
    %1426 = vmatpush1.msra.mxu0 0.0
    %1427 = vmatprep.subr.mxu0 0.0
    %1428 = vmatpush1.msra.mxu0 0.0
    %1429 = vmatprep.subr.mxu0 0.0
    %1430 = vmatpush1.msra.mxu0 0.0
    %1431 = vmatprep.subr.mxu0 0.0
    %1432 = vmatpush1.msra.mxu0 0.0
    %1433 = vmatprep.subr.mxu0 0.0
    %1434 = vmatpush1.msra.mxu0 %v1413
    %1435 = vmatprep.subr.mxu0 0.0
    %1436 = vmatpush1.msra.mxu0 %v1412
    %1437 = vmatprep.subr.mxu0 0.0
    %1438 = vmatpush1.msra.mxu0 %v1411
    %1439 = vmatprep.subr.mxu0 0.0
    %1440 = vmatpush1.msra.mxu0 %v1410
    %1441 = vmatprep.subr.mxu0 0.0
    %1442 = vmatpush1.msra.mxu0 %v1409
    %1443 = vmatprep.subr.mxu0 0.0
    %1444 = vmatpush1.msra.mxu0 %v1408
    %1445 = vmatprep.subr.mxu0 0.0
    %1446 = vmatpush1.msra.mxu0 %v1407
    %1447 = vmatprep.subr.mxu0 0.0
    %1448 = vmatpush1.msra.mxu0 %v1406
    %1449 = vmatprep.subr.mxu0 0.0
    %1450 = vmatpush2.msra.mxu0 0.0
    %1451 = vmatprep.subr.mxu0 0.0
    %1452 = vmatpush2.msra.mxu0 0.0
    %1453 = vmatprep.subr.mxu0 0.0
    %1454 = vmatpush2.msra.mxu0 0.0
    %1455 = vmatprep.subr.mxu0 0.0
    %1456 = vmatpush2.msra.mxu0 0.0
    %1457 = vmatprep.subr.mxu0 0.0
    %1458 = vmatpush2.msra.mxu0 0.0
    %1459 = vmatprep.subr.mxu0 0.0
    %1460 = vmatpush2.msra.mxu0 0.0
    %1461 = vmatprep.subr.mxu0 0.0
    %1462 = vmatpush2.msra.mxu0 0.0
    %1463 = vmatprep.subr.mxu0 0.0
    %1464 = vmatpush2.msra.mxu0 0.0
    %1465 = vmatprep.subr.mxu0 0.0
    %1466 = vmatpush2.msra.mxu0 0.0
    %1467 = vmatprep.subr.mxu0 0.0
    %1468 = vmatpush2.msra.mxu0 0.0
    %1469 = vmatprep.subr.mxu0 0.0
    %1470 = vmatpush2.msra.mxu0 0.0
    %1471 = vmatprep.subr.mxu0 0.0
    %1472 = vmatpush2.msra.mxu0 0.0
    %1473 = vmatprep.subr.mxu0 0.0
    %1474 = vmatpush2.msra.mxu0 0.0
    %1475 = vmatprep.subr.mxu0 0.0
    %1476 = vmatpush2.msra.mxu0 0.0
    %1477 = vmatprep.subr.mxu0 0.0
    %1478 = vmatpush2.msra.mxu0 0.0
    %1479 = vmatprep.subr.mxu0 0.0
    %1480 = vmatpush2.msra.mxu0 0.0
    %1481 = vmatprep.mubr.f32.mxu0 0.0
    %1482 = vmatmul.mubr.f32.gmra.mxu0 %v1415
    %v1483 = vpop.f32.mrf.mxu0
    %v1484 = vadd.f32 0.0, %v1483
    %v1485 = vpop.f32.mrf.mxu0
    %1486 = vdwg.mxu0
    %v1487 = vadd.f32 %v1381, %v1484
    %v1488 = vld [vmem:[%s8] sm:$0x1]
    %v1490 = vlaneseq
    %v1491 = vshrl.u32 %v1490, 7
    %v1492 = vsub.s32 0, %v1491
    %v1493 = vrot.slane %v1488, %v1492
    %v1495 = vadd.f32 %v1487, %v1493
    %v1496 = vld [vmem:[%s9] sm:$0xff]
    %v1497 = vld [vmem:[%s9 + $0x8] sm:$0xff]
    %v1498 = vld [vmem:[%s9 + $0x10] sm:$0xff]
    %v1499 = vld [vmem:[%s9 + $0x18] sm:$0xff]
    %v1500 = vld [vmem:[%s10] sm:$0x1]
    %v1502 = vlaneseq
    %v1503 = vshrl.u32 %v1502, 7
    %v1504 = vsub.s32 0, %v1503
    %v1505 = vrot.slane %v1500, %v1504
    %v1508 = vsel %vm238, %v1495, 0
    %1510 = vmatprep.subr.mxu0 0.0
    %1511 = vmatpush1.msra.mxu0 0.0
    %1512 = vmatprep.subr.mxu0 0.0
    %1513 = vmatpush1.msra.mxu0 0.0
    %1514 = vmatprep.subr.mxu0 0.0
    %1515 = vmatpush1.msra.mxu0 0.0
    %1516 = vmatprep.subr.mxu0 0.0
    %1517 = vmatpush1.msra.mxu0 0.0
    %1518 = vmatprep.subr.mxu0 0.0
    %1519 = vmatpush1.msra.mxu0 0.0
    %1520 = vmatprep.subr.mxu0 0.0
    %1521 = vmatpush1.msra.mxu0 0.0
    %1522 = vmatprep.subr.mxu0 0.0
    %1523 = vmatpush1.msra.mxu0 0.0
    %1524 = vmatprep.subr.mxu0 0.0
    %1525 = vmatpush1.msra.mxu0 0.0
    %1526 = vmatprep.subr.mxu0 0.0
    %1527 = vmatpush1.msra.mxu0 0.0
    %1528 = vmatprep.subr.mxu0 0.0
    %1529 = vmatpush1.msra.mxu0 0.0
    %1530 = vmatprep.subr.mxu0 0.0
    %1531 = vmatpush1.msra.mxu0 0.0
    %1532 = vmatprep.subr.mxu0 0.0
    %1533 = vmatpush1.msra.mxu0 0.0
    %1534 = vmatprep.subr.mxu0 0.0
    %1535 = vmatpush1.msra.mxu0 %v1499
    %1536 = vmatprep.subr.mxu0 0.0
    %1537 = vmatpush1.msra.mxu0 %v1498
    %1538 = vmatprep.subr.mxu0 0.0
    %1539 = vmatpush1.msra.mxu0 %v1497
    %1540 = vmatprep.subr.mxu0 0.0
    %1541 = vmatpush1.msra.mxu0 %v1496
    %1542 = vmatprep.subr.mxu0 0.0
    %1543 = vmatpush2.msra.mxu0 0.0
    %1544 = vmatprep.subr.mxu0 0.0
    %1545 = vmatpush2.msra.mxu0 0.0
    %1546 = vmatprep.subr.mxu0 0.0
    %1547 = vmatpush2.msra.mxu0 0.0
    %1548 = vmatprep.subr.mxu0 0.0
    %1549 = vmatpush2.msra.mxu0 0.0
    %1550 = vmatprep.subr.mxu0 0.0
    %1551 = vmatpush2.msra.mxu0 0.0
    %1552 = vmatprep.subr.mxu0 0.0
    %1553 = vmatpush2.msra.mxu0 0.0
    %1554 = vmatprep.subr.mxu0 0.0
    %1555 = vmatpush2.msra.mxu0 0.0
    %1556 = vmatprep.subr.mxu0 0.0
    %1557 = vmatpush2.msra.mxu0 0.0
    %1558 = vmatprep.subr.mxu0 0.0
    %1559 = vmatpush2.msra.mxu0 0.0
    %1560 = vmatprep.subr.mxu0 0.0
    %1561 = vmatpush2.msra.mxu0 0.0
    %1562 = vmatprep.subr.mxu0 0.0
    %1563 = vmatpush2.msra.mxu0 0.0
    %1564 = vmatprep.subr.mxu0 0.0
    %1565 = vmatpush2.msra.mxu0 0.0
    %1566 = vmatprep.subr.mxu0 0.0
    %1567 = vmatpush2.msra.mxu0 0.0
    %1568 = vmatprep.subr.mxu0 0.0
    %1569 = vmatpush2.msra.mxu0 0.0
    %1570 = vmatprep.subr.mxu0 0.0
    %1571 = vmatpush2.msra.mxu0 0.0
    %1572 = vmatprep.subr.mxu0 0.0
    %1573 = vmatpush2.msra.mxu0 0.0
    %1574 = vmatprep.mubr.f32.mxu0 0.0
    %1575 = vmatmul.mubr.f32.gmra.mxu0 %v1508
    %v1576 = vpop.f32.mrf.mxu0
    %v1577 = vadd.f32 %v1505, %v1576
    %v1578 = vpop.f32.mrf.mxu0
    %1579 = vdwg.mxu0
    %vm1580 = vcmask 9216
    %1581 = vst.msk [vmem:[#allocation4] sm:$0x3] %vm1580, %v1577
    // Predicated region
    $region46: #{net_forward.1} parent=1 // pred_check
      _
    $region47: #{net_forward.1} parent=1 // pred_check_branch
      %1583 = sbr.rel (0) target = $region49
    $region48: #{net_forward.1} parent=1 // pred_region
      %s1585 = ssub.s32 32, 32
      %1586 = vsyncadd [#allocation5], %s1585
      %s1588 = sshll.u32 [#allocation4], 4
      %s1589 = int_to_ptr.vmem [resolvable:$true] %s1588
      %1591 = dma.vmem_to_hbm [thread:$0]  %s1589, 32, %s11, [#allocation5]
    $region49: #{net_forward.1} parent=1 // pred_fallthru
      _
    // Predicated region
    $region50: #{net_forward.1} parent=1 // pred_check
      _
    $region51: #{net_forward.1} parent=1 // pred_check_branch
      %1593 = sbr.rel (0) target = $region53
    $region52: #{net_forward.1} parent=1 // pred_region
      %1594 = dma.done [#allocation5], 32
    $region53: #{net_forward.1} parent=1 // pred_fallthru
      _
    %1595 = vsyncpa [#allocation5], 1

</llo_original>
